<compile_context>
chip_gen: v5e
topology: v5e:2x2
jax: 0.10.0
libtpu: 0.0.40
codegen_flags: <defaults>
</compile_context>

<pallas_src>
import math

import jax
import jax.numpy as jnp
from jax import lax
from jax.experimental import pallas as pl
from jax.experimental.pallas import tpu as pltpu

BN_EPS = 1e-5
NEG_SLOPE = 0.01

INPUT_SIZE = 5
OUTPUT_SIZE = 7
HIDDEN = (512, 256, 128, 64)

# Lane-padded sizes (keep last dims multiples of 128 so loads/stores/MXU tiles are dense).
IN_PAD = 128
HID_PAD = (512, 256, 128, 128)   # last hidden 64 -> 128 (padded columns stay exactly 0)
OUT_PAD = 128                    # head 7 -> 128 (wrapper slices back to 7)

# gamma/beta slab layout: row 0 = gammas, row 1 = betas, lane-aligned segments.
_GB_OFFS = (0, 512, 768, 896)    # all multiples of 128
_GB_TOTAL = sum(HID_PAD)         # 1024


def _bn_leaky(z, gamma, beta):
    """Training-mode BatchNorm1d (batch stats, biased var) + leaky_relu, single pass.

    One-pass stats (E[z^2] - mean^2) with the BN affine folded into scale/shift.
    The two batch reductions are independent, shortening the serial chain.
    """
    inv_b = jnp.float32(1.0 / z.shape[0])
    mean = jnp.sum(z, axis=0, keepdims=True) * inv_b
    msq = jnp.sum(z * z, axis=0, keepdims=True) * inv_b
    var = jnp.maximum(msq - mean * mean, 0.0)
    scale = gamma * lax.rsqrt(var + BN_EPS)
    shift = beta - mean * scale
    zn = z * scale + shift
    return jnp.maximum(zn, NEG_SLOPE * zn)


def qnetwork_kernel(x_ref, w0_ref, w1_ref, w2_ref, w3_ref, w4_ref, b4_ref, gb_ref, o_ref):
    gb = gb_ref[...]                      # (2, 1024) f32: row 0 gammas, row 1 betas
    h = x_ref[...]                        # (B, 128) f32, lanes 5.. are zero padding

    # layer 0: fc0 (bias dropped, BN-cancelled) -> bn0 -> leaky_relu
    z = jnp.dot(h.astype(jnp.bfloat16), w0_ref[...], preferred_element_type=jnp.float32)
    h = _bn_leaky(z, gb[0:1, 0:512], gb[1:2, 0:512])

    # layer 1
    z = jnp.dot(h.astype(jnp.bfloat16), w1_ref[...], preferred_element_type=jnp.float32)
    h = _bn_leaky(z, gb[0:1, 512:768], gb[1:2, 512:768])

    # layer 2
    z = jnp.dot(h.astype(jnp.bfloat16), w2_ref[...], preferred_element_type=jnp.float32)
    h = _bn_leaky(z, gb[0:1, 768:896], gb[1:2, 768:896])

    # layer 3 (hidden padded 64 -> 128; zero weight columns keep padded lanes exactly 0)
    z = jnp.dot(h.astype(jnp.bfloat16), w3_ref[...], preferred_element_type=jnp.float32)
    h = _bn_leaky(z, gb[0:1, 896:1024], gb[1:2, 896:1024])

    # head: fc4 -> tanh ; lane-dense 128-wide store (wrapper slices [:, :7])
    z = jnp.dot(h.astype(jnp.bfloat16), w4_ref[...], preferred_element_type=jnp.float32)
    o_ref[...] = jnp.tanh(z + b4_ref[...])


def init_params(key):
    """Matches QNetwork.init_weights():
      Linear weights ~ kaiming_normal(fan_in, relu) => N(0, 2/fan_in); linear biases = 0
      (b0..b3 are dropped from the kernel since training-mode BN cancels them exactly);
      BN gamma = 1, beta = 0.
    Weights are stored lane-padded and in bf16 for the MXU."""
    dims = (INPUT_SIZE,) + HIDDEN + (OUTPUT_SIZE,)
    in_pads = (IN_PAD,) + HID_PAD            # padded fan_in per layer
    out_pads = HID_PAD + (OUT_PAD,)          # padded fan_out per layer

    keys = jax.random.split(key, len(dims) - 1)
    ws = []
    for li in range(len(dims) - 1):
        fan_in, fan_out = dims[li], dims[li + 1]
        std = math.sqrt(2.0 / fan_in)
        # stored as (in, out); equivalent in distribution to PyTorch's (out, in).T
        w = std * jax.random.normal(keys[li], (fan_in, fan_out), dtype=jnp.float32)
        w = jnp.pad(w, ((0, in_pads[li] - fan_in), (0, out_pads[li] - fan_out)))
        ws.append(w.astype(jnp.bfloat16))

    b4 = jnp.zeros((1, OUT_PAD), dtype=jnp.float32)   # head bias (zero-padded 7 -> 128)

    # Pack all BN gammas/betas into one (2, 1024) slab (row 0 = gamma, row 1 = beta).
    gammas, betas = [], []
    for li, fan_out in enumerate(HIDDEN):
        pad = HID_PAD[li] - fan_out
        gammas.append(jnp.pad(jnp.ones((fan_out,), jnp.float32), (0, pad), constant_values=1.0))
        betas.append(jnp.pad(jnp.zeros((fan_out,), jnp.float32), (0, pad)))
    gb = jnp.stack([jnp.concatenate(gammas), jnp.concatenate(betas)], axis=0)
    assert gb.shape == (2, _GB_TOTAL)

    return dict(ws=ws, b4=b4, gb=gb)


def qnetwork_forward(x, params):
    batch = x.shape[0]
    x_pad = jnp.pad(x.astype(jnp.float32), ((0, 0), (0, IN_PAD - x.shape[1])))
    inputs = (x_pad, *params["ws"], params["b4"], params["gb"])
    vmem = pl.BlockSpec(memory_space=pltpu.MemorySpace.VMEM)
    out = pl.pallas_call(
        qnetwork_kernel,
        out_shape=jax.ShapeDtypeStruct((batch, OUT_PAD), jnp.float32),
        in_specs=[vmem] * len(inputs),
        out_specs=vmem,
    )(*inputs)
    return out[:, :OUTPUT_SIZE]


if __name__ == "__main__":
    key = jax.random.PRNGKey(0)
    pkey, xkey = jax.random.split(key)

    params = init_params(pkey)

    batch = 8
    x = jax.random.normal(xkey, (batch, INPUT_SIZE), dtype=jnp.float32)

    out = qnetwork_forward(x, params)
    out = jax.block_until_ready(out)

    assert out.shape == (batch, OUTPUT_SIZE)
    assert bool(jnp.all(jnp.isfinite(out)))
    assert bool(jnp.all(jnp.abs(out) <= 1.0))   # tanh head range
    print("KERNEL_OK")
</pallas_src>

<mosaic_0001>
module attributes {stable_mosaic.version = 11 : i64} {
  func.func @qnetwork_kernel(%arg0: memref<8x128xf32, #tpu.memory_space<vmem>>, %arg1: memref<128x512xbf16, #tpu.memory_space<vmem>>, %arg2: memref<512x256xbf16, #tpu.memory_space<vmem>>, %arg3: memref<256x128xbf16, #tpu.memory_space<vmem>>, %arg4: memref<128x128xbf16, #tpu.memory_space<vmem>>, %arg5: memref<128x128xbf16, #tpu.memory_space<vmem>>, %arg6: memref<1x128xf32, #tpu.memory_space<vmem>>, %arg7: memref<2x1024xf32, #tpu.memory_space<vmem>>, %arg8: memref<8x128xf32, #tpu.memory_space<vmem>>) attributes {dimension_semantics = [], scalar_prefetch = 0 : i64, scratch_operands = 0 : i64, tpu.core_type = #tpu.core_type<tc>} {
    %c0 = arith.constant 0 : index
    %c0_0 = arith.constant 0 : index
    %0 = vector.load %arg7[%c0, %c0_0] : memref<2x1024xf32, #tpu.memory_space<vmem>>, vector<2x1024xf32>
    %c0_1 = arith.constant 0 : index
    %c0_2 = arith.constant 0 : index
    %1 = vector.load %arg0[%c0_1, %c0_2] : memref<8x128xf32, #tpu.memory_space<vmem>>, vector<8x128xf32>
    %2 = arith.truncf %1 : vector<8x128xf32> to vector<8x128xbf16>
    %c0_3 = arith.constant 0 : index
    %c0_4 = arith.constant 0 : index
    %3 = vector.load %arg1[%c0_3, %c0_4] : memref<128x512xbf16, #tpu.memory_space<vmem>>, vector<128x512xbf16>
    %cst = arith.constant dense<0.000000e+00> : vector<8x512xf32>
    %4 = tpu.matmul %2, %3, %cst {dimension_numbers = #tpu.dot_dimension_numbers<[1], [0], [0], [1], [0, 0, 1, 1], [], []>} : vector<8x128xbf16>, vector<128x512xbf16>, vector<8x512xf32> -> vector<8x512xf32>
    %5 = vector.extract_strided_slice %0 {offsets = [0, 0], sizes = [1, 512], strides = [1, 1]} : vector<2x1024xf32> to vector<1x512xf32>
    %6 = vector.extract_strided_slice %0 {offsets = [1, 0], sizes = [1, 512], strides = [1, 1]} : vector<2x1024xf32> to vector<1x512xf32>
    %cst_5 = arith.constant dense<0.000000e+00> : vector<512xf32>
    %7 = vector.multi_reduction <add>, %4, %cst_5 [0] : vector<8x512xf32> to vector<512xf32>
    %8 = vector.shape_cast %7 : vector<512xf32> to vector<1x512xf32>
    %cst_6 = arith.constant 1.250000e-01 : f32
    %9 = vector.broadcast %cst_6 : f32 to vector<1x512xf32>
    %10 = arith.mulf %8, %9 : vector<1x512xf32>
    %11 = arith.mulf %4, %4 : vector<8x512xf32>
    %cst_7 = arith.constant dense<0.000000e+00> : vector<512xf32>
    %12 = vector.multi_reduction <add>, %11, %cst_7 [0] : vector<8x512xf32> to vector<512xf32>
    %13 = vector.shape_cast %12 : vector<512xf32> to vector<1x512xf32>
    %cst_8 = arith.constant 1.250000e-01 : f32
    %14 = vector.broadcast %cst_8 : f32 to vector<1x512xf32>
    %15 = arith.mulf %13, %14 : vector<1x512xf32>
    %16 = arith.mulf %10, %10 : vector<1x512xf32>
    %17 = arith.subf %15, %16 : vector<1x512xf32>
    %cst_9 = arith.constant 0.000000e+00 : f32
    %18 = vector.broadcast %cst_9 : f32 to vector<1x512xf32>
    %19 = arith.maximumf %17, %18 : vector<1x512xf32>
    %cst_10 = arith.constant 9.99999974E-6 : f32
    %20 = vector.broadcast %cst_10 : f32 to vector<1x512xf32>
    %21 = arith.addf %19, %20 : vector<1x512xf32>
    %22 = math.rsqrt %21 : vector<1x512xf32>
    %23 = arith.mulf %5, %22 : vector<1x512xf32>
    %24 = arith.mulf %10, %23 : vector<1x512xf32>
    %25 = arith.subf %6, %24 : vector<1x512xf32>
    %26 = vector.broadcast %23 : vector<1x512xf32> to vector<8x512xf32>
    %27 = arith.mulf %4, %26 : vector<8x512xf32>
    %28 = vector.broadcast %25 : vector<1x512xf32> to vector<8x512xf32>
    %29 = arith.addf %27, %28 : vector<8x512xf32>
    %cst_11 = arith.constant 0.00999999977 : f32
    %30 = vector.broadcast %cst_11 : f32 to vector<8x512xf32>
    %31 = arith.mulf %30, %29 : vector<8x512xf32>
    %32 = arith.maximumf %29, %31 : vector<8x512xf32>
    %33 = arith.truncf %32 : vector<8x512xf32> to vector<8x512xbf16>
    %c0_12 = arith.constant 0 : index
    %c0_13 = arith.constant 0 : index
    %34 = vector.load %arg2[%c0_12, %c0_13] : memref<512x256xbf16, #tpu.memory_space<vmem>>, vector<512x256xbf16>
    %cst_14 = arith.constant dense<0.000000e+00> : vector<8x256xf32>
    %35 = tpu.matmul %33, %34, %cst_14 {dimension_numbers = #tpu.dot_dimension_numbers<[1], [0], [0], [1], [0, 0, 1, 1], [], []>} : vector<8x512xbf16>, vector<512x256xbf16>, vector<8x256xf32> -> vector<8x256xf32>
    %36 = vector.extract_strided_slice %0 {offsets = [0, 512], sizes = [1, 256], strides = [1, 1]} : vector<2x1024xf32> to vector<1x256xf32>
    %37 = vector.extract_strided_slice %0 {offsets = [1, 512], sizes = [1, 256], strides = [1, 1]} : vector<2x1024xf32> to vector<1x256xf32>
    %cst_15 = arith.constant dense<0.000000e+00> : vector<256xf32>
    %38 = vector.multi_reduction <add>, %35, %cst_15 [0] : vector<8x256xf32> to vector<256xf32>
    %39 = vector.shape_cast %38 : vector<256xf32> to vector<1x256xf32>
    %cst_16 = arith.constant 1.250000e-01 : f32
    %40 = vector.broadcast %cst_16 : f32 to vector<1x256xf32>
    %41 = arith.mulf %39, %40 : vector<1x256xf32>
    %42 = arith.mulf %35, %35 : vector<8x256xf32>
    %cst_17 = arith.constant dense<0.000000e+00> : vector<256xf32>
    %43 = vector.multi_reduction <add>, %42, %cst_17 [0] : vector<8x256xf32> to vector<256xf32>
    %44 = vector.shape_cast %43 : vector<256xf32> to vector<1x256xf32>
    %cst_18 = arith.constant 1.250000e-01 : f32
    %45 = vector.broadcast %cst_18 : f32 to vector<1x256xf32>
    %46 = arith.mulf %44, %45 : vector<1x256xf32>
    %47 = arith.mulf %41, %41 : vector<1x256xf32>
    %48 = arith.subf %46, %47 : vector<1x256xf32>
    %cst_19 = arith.constant 0.000000e+00 : f32
    %49 = vector.broadcast %cst_19 : f32 to vector<1x256xf32>
    %50 = arith.maximumf %48, %49 : vector<1x256xf32>
    %cst_20 = arith.constant 9.99999974E-6 : f32
    %51 = vector.broadcast %cst_20 : f32 to vector<1x256xf32>
    %52 = arith.addf %50, %51 : vector<1x256xf32>
    %53 = math.rsqrt %52 : vector<1x256xf32>
    %54 = arith.mulf %36, %53 : vector<1x256xf32>
    %55 = arith.mulf %41, %54 : vector<1x256xf32>
    %56 = arith.subf %37, %55 : vector<1x256xf32>
    %57 = vector.broadcast %54 : vector<1x256xf32> to vector<8x256xf32>
    %58 = arith.mulf %35, %57 : vector<8x256xf32>
    %59 = vector.broadcast %56 : vector<1x256xf32> to vector<8x256xf32>
    %60 = arith.addf %58, %59 : vector<8x256xf32>
    %cst_21 = arith.constant 0.00999999977 : f32
    %61 = vector.broadcast %cst_21 : f32 to vector<8x256xf32>
    %62 = arith.mulf %61, %60 : vector<8x256xf32>
    %63 = arith.maximumf %60, %62 : vector<8x256xf32>
    %64 = arith.truncf %63 : vector<8x256xf32> to vector<8x256xbf16>
    %c0_22 = arith.constant 0 : index
    %c0_23 = arith.constant 0 : index
    %65 = vector.load %arg3[%c0_22, %c0_23] : memref<256x128xbf16, #tpu.memory_space<vmem>>, vector<256x128xbf16>
    %cst_24 = arith.constant dense<0.000000e+00> : vector<8x128xf32>
    %66 = tpu.matmul %64, %65, %cst_24 {dimension_numbers = #tpu.dot_dimension_numbers<[1], [0], [0], [1], [0, 0, 1, 1], [], []>} : vector<8x256xbf16>, vector<256x128xbf16>, vector<8x128xf32> -> vector<8x128xf32>
    %67 = vector.extract_strided_slice %0 {offsets = [0, 768], sizes = [1, 128], strides = [1, 1]} : vector<2x1024xf32> to vector<1x128xf32>
    %68 = vector.extract_strided_slice %0 {offsets = [1, 768], sizes = [1, 128], strides = [1, 1]} : vector<2x1024xf32> to vector<1x128xf32>
    %cst_25 = arith.constant dense<0.000000e+00> : vector<128xf32>
    %69 = vector.multi_reduction <add>, %66, %cst_25 [0] : vector<8x128xf32> to vector<128xf32>
    %70 = vector.shape_cast %69 : vector<128xf32> to vector<1x128xf32>
    %cst_26 = arith.constant 1.250000e-01 : f32
    %71 = vector.broadcast %cst_26 : f32 to vector<1x128xf32>
    %72 = arith.mulf %70, %71 : vector<1x128xf32>
    %73 = arith.mulf %66, %66 : vector<8x128xf32>
    %cst_27 = arith.constant dense<0.000000e+00> : vector<128xf32>
    %74 = vector.multi_reduction <add>, %73, %cst_27 [0] : vector<8x128xf32> to vector<128xf32>
    %75 = vector.shape_cast %74 : vector<128xf32> to vector<1x128xf32>
    %cst_28 = arith.constant 1.250000e-01 : f32
    %76 = vector.broadcast %cst_28 : f32 to vector<1x128xf32>
    %77 = arith.mulf %75, %76 : vector<1x128xf32>
    %78 = arith.mulf %72, %72 : vector<1x128xf32>
    %79 = arith.subf %77, %78 : vector<1x128xf32>
    %cst_29 = arith.constant 0.000000e+00 : f32
    %80 = vector.broadcast %cst_29 : f32 to vector<1x128xf32>
    %81 = arith.maximumf %79, %80 : vector<1x128xf32>
    %cst_30 = arith.constant 9.99999974E-6 : f32
    %82 = vector.broadcast %cst_30 : f32 to vector<1x128xf32>
    %83 = arith.addf %81, %82 : vector<1x128xf32>
    %84 = math.rsqrt %83 : vector<1x128xf32>
    %85 = arith.mulf %67, %84 : vector<1x128xf32>
    %86 = arith.mulf %72, %85 : vector<1x128xf32>
    %87 = arith.subf %68, %86 : vector<1x128xf32>
    %88 = vector.broadcast %85 : vector<1x128xf32> to vector<8x128xf32>
    %89 = arith.mulf %66, %88 : vector<8x128xf32>
    %90 = vector.broadcast %87 : vector<1x128xf32> to vector<8x128xf32>
    %91 = arith.addf %89, %90 : vector<8x128xf32>
    %cst_31 = arith.constant 0.00999999977 : f32
    %92 = vector.broadcast %cst_31 : f32 to vector<8x128xf32>
    %93 = arith.mulf %92, %91 : vector<8x128xf32>
    %94 = arith.maximumf %91, %93 : vector<8x128xf32>
    %95 = arith.truncf %94 : vector<8x128xf32> to vector<8x128xbf16>
    %c0_32 = arith.constant 0 : index
    %c0_33 = arith.constant 0 : index
    %96 = vector.load %arg4[%c0_32, %c0_33] : memref<128x128xbf16, #tpu.memory_space<vmem>>, vector<128x128xbf16>
    %cst_34 = arith.constant dense<0.000000e+00> : vector<8x128xf32>
    %97 = tpu.matmul %95, %96, %cst_34 {dimension_numbers = #tpu.dot_dimension_numbers<[1], [0], [0], [1], [0, 0, 1, 1], [], []>} : vector<8x128xbf16>, vector<128x128xbf16>, vector<8x128xf32> -> vector<8x128xf32>
    %98 = vector.extract_strided_slice %0 {offsets = [0, 896], sizes = [1, 128], strides = [1, 1]} : vector<2x1024xf32> to vector<1x128xf32>
    %99 = vector.extract_strided_slice %0 {offsets = [1, 896], sizes = [1, 128], strides = [1, 1]} : vector<2x1024xf32> to vector<1x128xf32>
    %cst_35 = arith.constant dense<0.000000e+00> : vector<128xf32>
    %100 = vector.multi_reduction <add>, %97, %cst_35 [0] : vector<8x128xf32> to vector<128xf32>
    %101 = vector.shape_cast %100 : vector<128xf32> to vector<1x128xf32>
    %cst_36 = arith.constant 1.250000e-01 : f32
    %102 = vector.broadcast %cst_36 : f32 to vector<1x128xf32>
    %103 = arith.mulf %101, %102 : vector<1x128xf32>
    %104 = arith.mulf %97, %97 : vector<8x128xf32>
    %cst_37 = arith.constant dense<0.000000e+00> : vector<128xf32>
    %105 = vector.multi_reduction <add>, %104, %cst_37 [0] : vector<8x128xf32> to vector<128xf32>
    %106 = vector.shape_cast %105 : vector<128xf32> to vector<1x128xf32>
    %cst_38 = arith.constant 1.250000e-01 : f32
    %107 = vector.broadcast %cst_38 : f32 to vector<1x128xf32>
    %108 = arith.mulf %106, %107 : vector<1x128xf32>
    %109 = arith.mulf %103, %103 : vector<1x128xf32>
    %110 = arith.subf %108, %109 : vector<1x128xf32>
    %cst_39 = arith.constant 0.000000e+00 : f32
    %111 = vector.broadcast %cst_39 : f32 to vector<1x128xf32>
    %112 = arith.maximumf %110, %111 : vector<1x128xf32>
    %cst_40 = arith.constant 9.99999974E-6 : f32
    %113 = vector.broadcast %cst_40 : f32 to vector<1x128xf32>
    %114 = arith.addf %112, %113 : vector<1x128xf32>
    %115 = math.rsqrt %114 : vector<1x128xf32>
    %116 = arith.mulf %98, %115 : vector<1x128xf32>
    %117 = arith.mulf %103, %116 : vector<1x128xf32>
    %118 = arith.subf %99, %117 : vector<1x128xf32>
    %119 = vector.broadcast %116 : vector<1x128xf32> to vector<8x128xf32>
    %120 = arith.mulf %97, %119 : vector<8x128xf32>
    %121 = vector.broadcast %118 : vector<1x128xf32> to vector<8x128xf32>
    %122 = arith.addf %120, %121 : vector<8x128xf32>
    %cst_41 = arith.constant 0.00999999977 : f32
    %123 = vector.broadcast %cst_41 : f32 to vector<8x128xf32>
    %124 = arith.mulf %123, %122 : vector<8x128xf32>
    %125 = arith.maximumf %122, %124 : vector<8x128xf32>
    %126 = arith.truncf %125 : vector<8x128xf32> to vector<8x128xbf16>
    %c0_42 = arith.constant 0 : index
    %c0_43 = arith.constant 0 : index
    %127 = vector.load %arg5[%c0_42, %c0_43] : memref<128x128xbf16, #tpu.memory_space<vmem>>, vector<128x128xbf16>
    %cst_44 = arith.constant dense<0.000000e+00> : vector<8x128xf32>
    %128 = tpu.matmul %126, %127, %cst_44 {dimension_numbers = #tpu.dot_dimension_numbers<[1], [0], [0], [1], [0, 0, 1, 1], [], []>} : vector<8x128xbf16>, vector<128x128xbf16>, vector<8x128xf32> -> vector<8x128xf32>
    %c0_45 = arith.constant 0 : index
    %c0_46 = arith.constant 0 : index
    %129 = vector.load %arg6[%c0_45, %c0_46] : memref<1x128xf32, #tpu.memory_space<vmem>>, vector<1x128xf32>
    %130 = vector.broadcast %129 : vector<1x128xf32> to vector<8x128xf32>
    %131 = arith.addf %128, %130 : vector<8x128xf32>
    %132 = math.tanh %131 : vector<8x128xf32>
    %c0_47 = arith.constant 0 : index
    %c0_48 = arith.constant 0 : index
    %133 = vector.load %arg8[%c0_47, %c0_48] : memref<8x128xf32, #tpu.memory_space<vmem>>, vector<8x128xf32>
    tpu.vector_store %arg8[%c0_47, %c0_48], %132 {strides = array<i32>} : memref<8x128xf32, #tpu.memory_space<vmem>>, vector<8x128xf32>,
    return
  }
}

</mosaic_0001>

<llo_original>
// kernel: tpu_custom_call.1
$region0: #{tpu_custom_call.1}
  #allocation0 [shape = 'u32[]', space=smem, size = 0x4, offset = 0x4, fixed_abs, tag = 'smem constant byte address 0x4 - core index']
  #allocation1 [shape = 'u32[72,128]{1,0:T(1,128)}', space=vmem, size = 0x9000, scoped, tag = 'internal scratch']
  %s0 = inlined_call_operand.hbm [shape: f32[8,128], index: 0, kind: input, shape index: {}]
  %s1 = inlined_call_operand.hbm [shape: bf16[128,512], index: 1, kind: input, shape index: {}]
  %s2 = inlined_call_operand.hbm [shape: bf16[512,256], index: 2, kind: input, shape index: {}]
  %s3 = inlined_call_operand.hbm [shape: bf16[256,128], index: 3, kind: input, shape index: {}]
  %s4 = inlined_call_operand.hbm [shape: bf16[128,128], index: 4, kind: input, shape index: {}]
  %s5 = inlined_call_operand.hbm [shape: bf16[128,128], index: 5, kind: input, shape index: {}]
  %s6 = inlined_call_operand.vmem [shape: f32[1,128], index: 6, kind: input, shape index: {}]
  %s7 = inlined_call_operand.hbm [shape: f32[2,1024], index: 7, kind: input, shape index: {}]
  %s8 = inlined_call_operand.hbm [shape: f32[8,128], index: 8, kind: output, shape index: {}]
  %s9 = sld [smem:[#allocation0]]
  $region70: #{tpu_custom_call.1} parent=0
    _
  %s11 = ssub.s32 1, %s9
  %s12 = scalar_select 0, %s11, %s9
  $region1: #{tpu_custom_call.1} parent=0
    #allocation2 [shape = 'u8[4096]{0}', space=vmem, size = 0x1000, scoped, tag = 'input window, operand 0, single buffered']
    #allocation3 [shape = 's32[1]{0}', space=sflag, size = 0x4, scoped, tag = 'scoped memory for tpu_custom_call.1']
    #allocation4 [shape = 's32[1]{0}', space=sflag, size = 0x4, scoped, tag = 'scoped memory for tpu_custom_call.1']
    #allocation5 [shape = 'u8[131072]{0}', space=vmem, size = 0x20000, scoped, tag = 'input window, operand 1, single buffered']
    #allocation6 [shape = 's32[1]{0}', space=sflag, size = 0x4, scoped, tag = 'scoped memory for tpu_custom_call.1']
    #allocation7 [shape = 'u8[262144]{0}', space=vmem, size = 0x40000, scoped, tag = 'input window, operand 2, single buffered']
    #allocation8 [shape = 'u8[65536]{0}', space=vmem, size = 0x10000, scoped, tag = 'input window, operand 3, single buffered']
    #allocation9 [shape = 's32[1]{0}', space=sflag, size = 0x4, scoped, tag = 'scoped memory for tpu_custom_call.1']
    #allocation10 [shape = 'u8[32768]{0}', space=vmem, size = 0x8000, scoped, tag = 'input window, operand 4, single buffered']
    #allocation11 [shape = 'u8[32768]{0}', space=vmem, size = 0x8000, scoped, tag = 'input window, operand 5, single buffered']
    #allocation12 [shape = 's32[1]{0}', space=sflag, size = 0x4, scoped, tag = 'scoped memory for tpu_custom_call.1']
    #allocation13 [shape = 'u8[8192]{0}', space=vmem, size = 0x2000, scoped, tag = 'input window, operand 7, single buffered']
    #allocation14 [shape = 'u8[4096]{0}', space=vmem, size = 0x1000, scoped, tag = 'output window, operand 0, single buffered']
    %13 = vsyncpa [#allocation3], 0
    %14 = vsyncpa [#allocation6], 0
    %15 = vsyncpa [#allocation9], 0
    %16 = vsyncpa [#allocation12], 0
    %17 = vsyncpa [#allocation4], 0
    // Predicated region
    $region2: #{tpu_custom_call.1} parent=1 // pred_check
      _
    $region3: #{tpu_custom_call.1} parent=1 // pred_check_branch
      %19 = sbr.rel (0) target = $region5
    $region4: #{tpu_custom_call.1} parent=1 // pred_region
      %21 = vsyncadd [#allocation3], 0
      %s23 = sshll.u32 %s0, 4
      %s24 = int_to_ptr.hbm [resolvable:$true] %s23
      %s25 = sshll.u32 [#allocation2], 4
      %s26 = int_to_ptr.vmem [resolvable:$true] %s25
      %28 = dma.hbm_to_vmem [thread:$0]  %s24, 128, %s26, [#allocation3]
    $region5: #{tpu_custom_call.1} parent=1 // pred_fallthru
      _
    // Predicated region
    $region6: #{tpu_custom_call.1} parent=1 // pred_check
      _
    $region7: #{tpu_custom_call.1} parent=1 // pred_check_branch
      %30 = sbr.rel (0) target = $region9
    $region8: #{tpu_custom_call.1} parent=1 // pred_region
      %32 = vsyncadd [#allocation6], 0
      %s33 = sshll.u32 %s1, 4
      %s34 = int_to_ptr.hbm [resolvable:$true] %s33
      %s35 = sshll.u32 [#allocation5], 4
      %s36 = int_to_ptr.vmem [resolvable:$true] %s35
      %41 = dma.hbm_to_vmem [thread:$0]  %s34, 4096, %s36, [#allocation6], 256, 256, 16
    $region9: #{tpu_custom_call.1} parent=1 // pred_fallthru
      _
    // Predicated region
    $region10: #{tpu_custom_call.1} parent=1 // pred_check
      _
    $region11: #{tpu_custom_call.1} parent=1 // pred_check_branch
      %43 = sbr.rel (0) target = $region13
    $region12: #{tpu_custom_call.1} parent=1 // pred_region
      %45 = vsyncadd [#allocation6], 0
      %s46 = sshll.u32 %s2, 4
      %s47 = int_to_ptr.hbm [resolvable:$true] %s46
      %s48 = sshll.u32 [#allocation7], 4
      %s49 = int_to_ptr.vmem [resolvable:$true] %s48
      %54 = dma.hbm_to_vmem [thread:$0]  %s47, 8192, %s49, [#allocation6], 128, 128, 8
    $region13: #{tpu_custom_call.1} parent=1 // pred_fallthru
      _
    // Predicated region
    $region14: #{tpu_custom_call.1} parent=1 // pred_check
      _
    $region15: #{tpu_custom_call.1} parent=1 // pred_check_branch
      %56 = sbr.rel (0) target = $region17
    $region16: #{tpu_custom_call.1} parent=1 // pred_region
      %58 = vsyncadd [#allocation9], 0
      %s59 = sshll.u32 %s3, 4
      %s60 = int_to_ptr.hbm [resolvable:$true] %s59
      %s61 = sshll.u32 [#allocation8], 4
      %s62 = int_to_ptr.vmem [resolvable:$true] %s61
      %67 = dma.hbm_to_vmem [thread:$0]  %s60, 2048, %s62, [#allocation9], 64, 64, 4
    $region17: #{tpu_custom_call.1} parent=1 // pred_fallthru
      _
    // Predicated region
    $region18: #{tpu_custom_call.1} parent=1 // pred_check
      _
    $region19: #{tpu_custom_call.1} parent=1 // pred_check_branch
      %69 = sbr.rel (0) target = $region21
    $region20: #{tpu_custom_call.1} parent=1 // pred_region
      %71 = vsyncadd [#allocation9], 0
      %s72 = sshll.u32 %s4, 4
      %s73 = int_to_ptr.hbm [resolvable:$true] %s72
      %s74 = sshll.u32 [#allocation10], 4
      %s75 = int_to_ptr.vmem [resolvable:$true] %s74
      %80 = dma.hbm_to_vmem [thread:$0]  %s73, 1024, %s75, [#allocation9], 64, 64, 4
    $region21: #{tpu_custom_call.1} parent=1 // pred_fallthru
      _
    // Predicated region
    $region22: #{tpu_custom_call.1} parent=1 // pred_check
      _
    $region23: #{tpu_custom_call.1} parent=1 // pred_check_branch
      %82 = sbr.rel (0) target = $region25
    $region24: #{tpu_custom_call.1} parent=1 // pred_region
      %84 = vsyncadd [#allocation12], 0
      %s85 = sshll.u32 %s5, 4
      %s86 = int_to_ptr.hbm [resolvable:$true] %s85
      %s87 = sshll.u32 [#allocation11], 4
      %s88 = int_to_ptr.vmem [resolvable:$true] %s87
      %93 = dma.hbm_to_vmem [thread:$0]  %s86, 1024, %s88, [#allocation12], 64, 64, 4
    $region25: #{tpu_custom_call.1} parent=1 // pred_fallthru
      _
    // Predicated region
    $region26: #{tpu_custom_call.1} parent=1 // pred_check
      _
    $region27: #{tpu_custom_call.1} parent=1 // pred_check_branch
      %95 = sbr.rel (0) target = $region29
    $region28: #{tpu_custom_call.1} parent=1 // pred_region
      _
    $region29: #{tpu_custom_call.1} parent=1 // pred_fallthru
      _
    // Predicated region
    $region30: #{tpu_custom_call.1} parent=1 // pred_check
      _
    $region31: #{tpu_custom_call.1} parent=1 // pred_check_branch
      %97 = sbr.rel (0) target = $region33
    $region32: #{tpu_custom_call.1} parent=1 // pred_region
      %99 = vsyncadd [#allocation12], 0
      %s101 = sshll.u32 %s7, 4
      %s102 = int_to_ptr.hbm [resolvable:$true] %s101
      %s103 = sshll.u32 [#allocation13], 4
      %s104 = int_to_ptr.vmem [resolvable:$true] %s103
      %106 = dma.hbm_to_vmem [thread:$0]  %s102, 256, %s104, [#allocation12]
    $region33: #{tpu_custom_call.1} parent=1 // pred_fallthru
      _
    // Predicated region
    $region34: #{tpu_custom_call.1} parent=1 // pred_check
      _
    $region35: #{tpu_custom_call.1} parent=1 // pred_check_branch
      %108 = sbr.rel (0) target = $region37
    $region36: #{tpu_custom_call.1} parent=1 // pred_region
      %110 = dma.done [#allocation3], 128
    $region37: #{tpu_custom_call.1} parent=1 // pred_fallthru
      _
    // Predicated region
    $region38: #{tpu_custom_call.1} parent=1 // pred_check
      _
    $region39: #{tpu_custom_call.1} parent=1 // pred_check_branch
      %112 = sbr.rel (0) target = $region41
    $region40: #{tpu_custom_call.1} parent=1 // pred_region
      %114 = dma.done [#allocation6], 4096
    $region41: #{tpu_custom_call.1} parent=1 // pred_fallthru
      _
    // Predicated region
    $region42: #{tpu_custom_call.1} parent=1 // pred_check
      _
    $region43: #{tpu_custom_call.1} parent=1 // pred_check_branch
      %116 = sbr.rel (0) target = $region45
    $region44: #{tpu_custom_call.1} parent=1 // pred_region
      %118 = dma.done [#allocation6], 8192
    $region45: #{tpu_custom_call.1} parent=1 // pred_fallthru
      _
    // Predicated region
    $region46: #{tpu_custom_call.1} parent=1 // pred_check
      _
    $region47: #{tpu_custom_call.1} parent=1 // pred_check_branch
      %120 = sbr.rel (0) target = $region49
    $region48: #{tpu_custom_call.1} parent=1 // pred_region
      %122 = dma.done [#allocation9], 2048
    $region49: #{tpu_custom_call.1} parent=1 // pred_fallthru
      _
    // Predicated region
    $region50: #{tpu_custom_call.1} parent=1 // pred_check
      _
    $region51: #{tpu_custom_call.1} parent=1 // pred_check_branch
      %124 = sbr.rel (0) target = $region53
    $region52: #{tpu_custom_call.1} parent=1 // pred_region
      %126 = dma.done [#allocation9], 1024
    $region53: #{tpu_custom_call.1} parent=1 // pred_fallthru
      _
    // Predicated region
    $region54: #{tpu_custom_call.1} parent=1 // pred_check
      _
    $region55: #{tpu_custom_call.1} parent=1 // pred_check_branch
      %128 = sbr.rel (0) target = $region57
    $region56: #{tpu_custom_call.1} parent=1 // pred_region
      %130 = dma.done [#allocation12], 1024
    $region57: #{tpu_custom_call.1} parent=1 // pred_fallthru
      _
    // Predicated region
    $region58: #{tpu_custom_call.1} parent=1 // pred_check
      _
    $region59: #{tpu_custom_call.1} parent=1 // pred_check_branch
      %132 = sbr.rel (0) target = $region61
    $region60: #{tpu_custom_call.1} parent=1 // pred_region
      %134 = dma.done [#allocation12], 256
    $region61: #{tpu_custom_call.1} parent=1 // pred_fallthru
      _
    %v135 = vld [vmem:[#allocation13] sm:$0xff]
    %v136 = vld [vmem:[#allocation13 + $0x8] sm:$0xff]
    %v137 = vld [vmem:[#allocation2] sm:$0xff]
    %v138 = vpack.c.bf16 %v137, %v137
    %v139 = vld [vmem:[#allocation5] sm:$0xff]
    %v140 = vld [vmem:[#allocation5 + $0x8] sm:$0xff]
    %v141 = vld [vmem:[#allocation5 + $0x10] sm:$0xff]
    %v142 = vld [vmem:[#allocation5 + $0x18] sm:$0xff]
    %v143 = vld [vmem:[#allocation5 + $0x20] sm:$0xff]
    %v144 = vld [vmem:[#allocation5 + $0x28] sm:$0xff]
    %v145 = vld [vmem:[#allocation5 + $0x30] sm:$0xff]
    %v146 = vld [vmem:[#allocation5 + $0x38] sm:$0xff]
    %v147 = vld [vmem:[#allocation5 + $0x40] sm:$0xff]
    %v148 = vld [vmem:[#allocation5 + $0x48] sm:$0xff]
    %v149 = vld [vmem:[#allocation5 + $0x50] sm:$0xff]
    %v150 = vld [vmem:[#allocation5 + $0x58] sm:$0xff]
    %v151 = vld [vmem:[#allocation5 + $0x60] sm:$0xff]
    %v152 = vld [vmem:[#allocation5 + $0x68] sm:$0xff]
    %v153 = vld [vmem:[#allocation5 + $0x70] sm:$0xff]
    %v154 = vld [vmem:[#allocation5 + $0x78] sm:$0xff]
    %v155 = vld [vmem:[#allocation5 + $0x80] sm:$0xff]
    %v156 = vld [vmem:[#allocation5 + $0x88] sm:$0xff]
    %v157 = vld [vmem:[#allocation5 + $0x90] sm:$0xff]
    %v158 = vld [vmem:[#allocation5 + $0x98] sm:$0xff]
    %v159 = vld [vmem:[#allocation5 + $0xa0] sm:$0xff]
    %v160 = vld [vmem:[#allocation5 + $0xa8] sm:$0xff]
    %v161 = vld [vmem:[#allocation5 + $0xb0] sm:$0xff]
    %v162 = vld [vmem:[#allocation5 + $0xb8] sm:$0xff]
    %v163 = vld [vmem:[#allocation5 + $0xc0] sm:$0xff]
    %v164 = vld [vmem:[#allocation5 + $0xc8] sm:$0xff]
    %v165 = vld [vmem:[#allocation5 + $0xd0] sm:$0xff]
    %v166 = vld [vmem:[#allocation5 + $0xd8] sm:$0xff]
    %v167 = vld [vmem:[#allocation5 + $0xe0] sm:$0xff]
    %v168 = vld [vmem:[#allocation5 + $0xe8] sm:$0xff]
    %v169 = vld [vmem:[#allocation5 + $0xf0] sm:$0xff]
    %v170 = vld [vmem:[#allocation5 + $0xf8] sm:$0xff]
    %v203 = vunpack.c.l.b16 %v139
    %v204 = vunpack.c.h.b16 %v139
    %v205 = vunpack.c.l.b16 %v140
    %v206 = vunpack.c.h.b16 %v140
    %v207 = vunpack.c.l.b16 %v141
    %v208 = vunpack.c.h.b16 %v141
    %v209 = vunpack.c.l.b16 %v142
    %v210 = vunpack.c.h.b16 %v142
    %v211 = vunpack.c.l.b16 %v143
    %v212 = vunpack.c.h.b16 %v143
    %v213 = vunpack.c.l.b16 %v144
    %v214 = vunpack.c.h.b16 %v144
    %v215 = vunpack.c.l.b16 %v145
    %v216 = vunpack.c.h.b16 %v145
    %v217 = vunpack.c.l.b16 %v146
    %v218 = vunpack.c.h.b16 %v146
    %v219 = vunpack.c.l.b16 %v147
    %v220 = vunpack.c.h.b16 %v147
    %v221 = vunpack.c.l.b16 %v148
    %v222 = vunpack.c.h.b16 %v148
    %v223 = vunpack.c.l.b16 %v149
    %v224 = vunpack.c.h.b16 %v149
    %v225 = vunpack.c.l.b16 %v150
    %v226 = vunpack.c.h.b16 %v150
    %v227 = vunpack.c.l.b16 %v151
    %v228 = vunpack.c.h.b16 %v151
    %v229 = vunpack.c.l.b16 %v152
    %v230 = vunpack.c.h.b16 %v152
    %v231 = vunpack.c.l.b16 %v153
    %v232 = vunpack.c.h.b16 %v153
    %v233 = vunpack.c.l.b16 %v154
    %v234 = vunpack.c.h.b16 %v154
    %v235 = vunpack.c.l.b16 %v155
    %v236 = vunpack.c.h.b16 %v155
    %v237 = vunpack.c.l.b16 %v156
    %v238 = vunpack.c.h.b16 %v156
    %v239 = vunpack.c.l.b16 %v157
    %v240 = vunpack.c.h.b16 %v157
    %v241 = vunpack.c.l.b16 %v158
    %v242 = vunpack.c.h.b16 %v158
    %v243 = vunpack.c.l.b16 %v159
    %v244 = vunpack.c.h.b16 %v159
    %v245 = vunpack.c.l.b16 %v160
    %v246 = vunpack.c.h.b16 %v160
    %v247 = vunpack.c.l.b16 %v161
    %v248 = vunpack.c.h.b16 %v161
    %v249 = vunpack.c.l.b16 %v162
    %v250 = vunpack.c.h.b16 %v162
    %v251 = vunpack.c.l.b16 %v163
    %v252 = vunpack.c.h.b16 %v163
    %v253 = vunpack.c.l.b16 %v164
    %v254 = vunpack.c.h.b16 %v164
    %v255 = vunpack.c.l.b16 %v165
    %v256 = vunpack.c.h.b16 %v165
    %v257 = vunpack.c.l.b16 %v166
    %v258 = vunpack.c.h.b16 %v166
    %v259 = vunpack.c.l.b16 %v167
    %v260 = vunpack.c.h.b16 %v167
    %v261 = vunpack.c.l.b16 %v168
    %v262 = vunpack.c.h.b16 %v168
    %v263 = vunpack.c.l.b16 %v169
    %v264 = vunpack.c.h.b16 %v169
    %v265 = vunpack.c.l.b16 %v170
    %v266 = vunpack.c.h.b16 %v170
    %v267 = vpack.c.b16 %v207, %v203
    %v268 = vpack.c.b16 %v208, %v204
    %v269 = vpack.c.b16 %v209, %v205
    %v270 = vpack.c.b16 %v210, %v206
    %v271 = vpack.c.b16 %v215, %v211
    %v272 = vpack.c.b16 %v216, %v212
    %v273 = vpack.c.b16 %v217, %v213
    %v274 = vpack.c.b16 %v218, %v214
    %v275 = vpack.c.b16 %v223, %v219
    %v276 = vpack.c.b16 %v224, %v220
    %v277 = vpack.c.b16 %v225, %v221
    %v278 = vpack.c.b16 %v226, %v222
    %v279 = vpack.c.b16 %v231, %v227
    %v280 = vpack.c.b16 %v232, %v228
    %v281 = vpack.c.b16 %v233, %v229
    %v282 = vpack.c.b16 %v234, %v230
    %v283 = vpack.c.b16 %v239, %v235
    %v284 = vpack.c.b16 %v240, %v236
    %v285 = vpack.c.b16 %v241, %v237
    %v286 = vpack.c.b16 %v242, %v238
    %v287 = vpack.c.b16 %v247, %v243
    %v288 = vpack.c.b16 %v248, %v244
    %v289 = vpack.c.b16 %v249, %v245
    %v290 = vpack.c.b16 %v250, %v246
    %v291 = vpack.c.b16 %v255, %v251
    %v292 = vpack.c.b16 %v256, %v252
    %v293 = vpack.c.b16 %v257, %v253
    %v294 = vpack.c.b16 %v258, %v254
    %v295 = vpack.c.b16 %v263, %v259
    %v296 = vpack.c.b16 %v264, %v260
    %v297 = vpack.c.b16 %v265, %v261
    %v298 = vpack.c.b16 %v266, %v262
    %331 = vmatpush.bf16.msra.mxu0 %v295
    %332 = vmatpush.bf16.msra.mxu0 %v291
    %333 = vmatpush.bf16.msra.mxu0 %v287
    %334 = vmatpush.bf16.msra.mxu0 %v283
    %335 = vmatpush.bf16.msra.mxu0 %v279
    %336 = vmatpush.bf16.msra.mxu0 %v275
    %337 = vmatpush.bf16.msra.mxu0 %v271
    %338 = vmatpush.bf16.msra.mxu0 %v267
    %339 = vmatmul.bf16.gmra.mxu0 %v138
    %v340 = vpop.f32.mrf.mxu0
    %v341 = vadd.f32 0.0, %v340
    %v342 = vpop.f32.mrf.mxu0
    %343 = vdwg.mxu0
    %344 = vmatpush.bf16.msra.mxu0 %v296
    %345 = vmatpush.bf16.msra.mxu0 %v292
    %346 = vmatpush.bf16.msra.mxu0 %v288
    %347 = vmatpush.bf16.msra.mxu0 %v284
    %348 = vmatpush.bf16.msra.mxu0 %v280
    %349 = vmatpush.bf16.msra.mxu0 %v276
    %350 = vmatpush.bf16.msra.mxu0 %v272
    %351 = vmatpush.bf16.msra.mxu0 %v268
    %352 = vmatmul.bf16.gmra.mxu0 %v138
    %v353 = vpop.f32.mrf.mxu0
    %v354 = vadd.f32 0.0, %v353
    %v355 = vpop.f32.mrf.mxu0
    %356 = vdwg.mxu0
    %357 = vmatpush.bf16.msra.mxu0 %v297
    %358 = vmatpush.bf16.msra.mxu0 %v293
    %359 = vmatpush.bf16.msra.mxu0 %v289
    %360 = vmatpush.bf16.msra.mxu0 %v285
    %361 = vmatpush.bf16.msra.mxu0 %v281
    %362 = vmatpush.bf16.msra.mxu0 %v277
    %363 = vmatpush.bf16.msra.mxu0 %v273
    %364 = vmatpush.bf16.msra.mxu0 %v269
    %365 = vmatmul.bf16.gmra.mxu0 %v138
    %v366 = vpop.f32.mrf.mxu0
    %v367 = vadd.f32 0.0, %v366
    %v368 = vpop.f32.mrf.mxu0
    %369 = vdwg.mxu0
    %370 = vmatpush.bf16.msra.mxu0 %v298
    %371 = vmatpush.bf16.msra.mxu0 %v294
    %372 = vmatpush.bf16.msra.mxu0 %v290
    %373 = vmatpush.bf16.msra.mxu0 %v286
    %374 = vmatpush.bf16.msra.mxu0 %v282
    %375 = vmatpush.bf16.msra.mxu0 %v278
    %376 = vmatpush.bf16.msra.mxu0 %v274
    %377 = vmatpush.bf16.msra.mxu0 %v270
    %378 = vmatmul.bf16.gmra.mxu0 %v138
    %v379 = vpop.f32.mrf.mxu0
    %v380 = vadd.f32 0.0, %v379
    %v381 = vpop.f32.mrf.mxu0
    %382 = vdwg.mxu0
    %v383 = vrot.slane %v341, 4
    %v384 = vadd.f32 %v341, %v383
    %v385 = vrot.slane %v384, 2
    %v386 = vadd.f32 %v384, %v385
    %v387 = vrot.slane %v386, 1
    %v388 = vadd.f32 %v386, %v387
    %v389 = vrot.slane %v354, 4
    %v390 = vadd.f32 %v354, %v389
    %v391 = vrot.slane %v390, 2
    %v392 = vadd.f32 %v390, %v391
    %v393 = vrot.slane %v392, 1
    %v394 = vadd.f32 %v392, %v393
    %v395 = vrot.slane %v367, 4
    %v396 = vadd.f32 %v367, %v395
    %v397 = vrot.slane %v396, 2
    %v398 = vadd.f32 %v396, %v397
    %v399 = vrot.slane %v398, 1
    %v400 = vadd.f32 %v398, %v399
    %v401 = vrot.slane %v380, 4
    %v402 = vadd.f32 %v380, %v401
    %v403 = vrot.slane %v402, 2
    %v404 = vadd.f32 %v402, %v403
    %v405 = vrot.slane %v404, 1
    %v406 = vadd.f32 %v404, %v405
    %v407 = vmul.f32 %v388, 0.125
    %v408 = vmul.f32 %v394, 0.125
    %v409 = vmul.f32 %v400, 0.125
    %v410 = vmul.f32 %v406, 0.125
    %v411 = vmul.f32 %v341, %v341
    %v412 = vmul.f32 %v354, %v354
    %v413 = vmul.f32 %v367, %v367
    %v414 = vmul.f32 %v380, %v380
    %v415 = vrot.slane %v411, 4
    %v416 = vadd.f32 %v411, %v415
    %v417 = vrot.slane %v416, 2
    %v418 = vadd.f32 %v416, %v417
    %v419 = vrot.slane %v418, 1
    %v420 = vadd.f32 %v418, %v419
    %v421 = vrot.slane %v412, 4
    %v422 = vadd.f32 %v412, %v421
    %v423 = vrot.slane %v422, 2
    %v424 = vadd.f32 %v422, %v423
    %v425 = vrot.slane %v424, 1
    %v426 = vadd.f32 %v424, %v425
    %v427 = vrot.slane %v413, 4
    %v428 = vadd.f32 %v413, %v427
    %v429 = vrot.slane %v428, 2
    %v430 = vadd.f32 %v428, %v429
    %v431 = vrot.slane %v430, 1
    %v432 = vadd.f32 %v430, %v431
    %v433 = vrot.slane %v414, 4
    %v434 = vadd.f32 %v414, %v433
    %v435 = vrot.slane %v434, 2
    %v436 = vadd.f32 %v434, %v435
    %v437 = vrot.slane %v436, 1
    %v438 = vadd.f32 %v436, %v437
    %v439 = vmul.f32 %v420, 0.125
    %v440 = vmul.f32 %v426, 0.125
    %v441 = vmul.f32 %v432, 0.125
    %v442 = vmul.f32 %v438, 0.125
    %v443 = vmul.f32 %v407, %v407
    %v444 = vmul.f32 %v408, %v408
    %v445 = vmul.f32 %v409, %v409
    %v446 = vmul.f32 %v410, %v410
    %v447 = vsub.f32 %v439, %v443
    %v448 = vsub.f32 %v440, %v444
    %v449 = vsub.f32 %v441, %v445
    %v450 = vsub.f32 %v442, %v446
    %v451 = vmax.f32 %v447, 0.0
    %v452 = vmax.f32 %v448, 0.0
    %v453 = vmax.f32 %v449, 0.0
    %v454 = vmax.f32 %v450, 0.0
    %v455 = vadd.f32 %v451, 1e-05
    %v456 = vadd.f32 %v452, 1e-05
    %v457 = vadd.f32 %v453, 1e-05
    %v458 = vadd.f32 %v454, 1e-05
    %v459 = vrsqrt.pop %v455
    %v460 = vmul.f32 %v459, %v455
    %v461 = vmul.f32 %v460, %v459
    %v462 = vmul.f32 0.5, %v461
    %v463 = vsub.f32 1.5, %v462
    %v464 = vmul.f32 %v459, %v463
    %vm465 = vweird.f32 %v455
    %vm466 = vweird.f32 %v459
    %vm467 = vmor %vm465, %vm466
    %v468 = vsel %vm467, %v459, %v464
    %v469 = vrsqrt.pop %v456
    %v470 = vmul.f32 %v469, %v456
    %v471 = vmul.f32 %v470, %v469
    %v472 = vmul.f32 0.5, %v471
    %v473 = vsub.f32 1.5, %v472
    %v474 = vmul.f32 %v469, %v473
    %vm475 = vweird.f32 %v456
    %vm476 = vweird.f32 %v469
    %vm477 = vmor %vm475, %vm476
    %v478 = vsel %vm477, %v469, %v474
    %v479 = vrsqrt.pop %v457
    %v480 = vmul.f32 %v479, %v457
    %v481 = vmul.f32 %v480, %v479
    %v482 = vmul.f32 0.5, %v481
    %v483 = vsub.f32 1.5, %v482
    %v484 = vmul.f32 %v479, %v483
    %vm485 = vweird.f32 %v457
    %vm486 = vweird.f32 %v479
    %vm487 = vmor %vm485, %vm486
    %v488 = vsel %vm487, %v479, %v484
    %v489 = vrsqrt.pop %v458
    %v490 = vmul.f32 %v489, %v458
    %v491 = vmul.f32 %v490, %v489
    %v492 = vmul.f32 0.5, %v491
    %v493 = vsub.f32 1.5, %v492
    %v494 = vmul.f32 %v489, %v493
    %vm495 = vweird.f32 %v458
    %vm496 = vweird.f32 %v489
    %vm497 = vmor %vm495, %vm496
    %v498 = vsel %vm497, %v489, %v494
    %v503 = vrot.slane %v478, 6
    %v504 = vrot.slane %v488, 4
    %v505 = vrot.slane %v498, 2
    %vm506 = vcmask 1041408
    %v507 = vsel %vm506, %v468, %v503
    %vm508 = vcmask 1045508
    %v509 = vsel %vm508, %v504, %v505
    %vm510 = vcmask 1043456
    %v511 = vsel %vm510, %v507, %v509
    %v513 = vmul.f32 %v135, %v511
    %v515 = vperm.slane %v513, 0
    %v516 = vperm.slane %v513, 2
    %v517 = vperm.slane %v513, 4
    %v518 = vperm.slane %v513, 6
    %v523 = vmul.f32 %v407, %v515
    %v524 = vmul.f32 %v408, %v516
    %v525 = vmul.f32 %v409, %v517
    %v526 = vmul.f32 %v410, %v518
    %v531 = vrot.slane %v524, 6
    %v532 = vrot.slane %v525, 4
    %v533 = vrot.slane %v526, 2
    %v534 = vsel %vm506, %v523, %v531
    %v535 = vsel %vm508, %v532, %v533
    %v536 = vsel %vm510, %v534, %v535
    %v537 = vrot.slane %v536, 7
    %v539 = vsub.f32 %v135, %v537
    %v540 = vperm.slane %v515, 0
    %v541 = vperm.slane %v516, 0
    %v542 = vperm.slane %v517, 0
    %v543 = vperm.slane %v518, 0
    %v544 = vmul.f32 %v341, %v540
    %v545 = vmul.f32 %v354, %v541
    %v546 = vmul.f32 %v367, %v542
    %v547 = vmul.f32 %v380, %v543
    %v549 = vperm.slane %v539, 1
    %v550 = vperm.slane %v539, 3
    %v551 = vperm.slane %v539, 5
    %v552 = vperm.slane %v539, 7
    %v557 = vperm.slane %v549, 1
    %v558 = vperm.slane %v550, 1
    %v559 = vperm.slane %v551, 1
    %v560 = vperm.slane %v552, 1
    %v561 = vadd.f32 %v544, %v557
    %v562 = vadd.f32 %v545, %v558
    %v563 = vadd.f32 %v546, %v559
    %v564 = vadd.f32 %v547, %v560
    %v565 = vmul.f32 %v561, 0.01
    %v566 = vmul.f32 %v562, 0.01
    %v567 = vmul.f32 %v563, 0.01
    %v568 = vmul.f32 %v564, 0.01
    %v569 = vmax.f32 %v561, %v565
    %v570 = vmax.f32 %v562, %v566
    %v571 = vmax.f32 %v563, %v567
    %v572 = vmax.f32 %v564, %v568
    %v573 = vpack.c.bf16 %v569, %v569
    %v574 = vpack.c.bf16 %v570, %v570
    %v575 = vpack.c.bf16 %v571, %v571
    %v576 = vpack.c.bf16 %v572, %v572
    %v577 = vld [vmem:[#allocation7] sm:$0xff]
    %v578 = vld [vmem:[#allocation7 + $0x8] sm:$0xff]
    %v579 = vld [vmem:[#allocation7 + $0x10] sm:$0xff]
    %v580 = vld [vmem:[#allocation7 + $0x18] sm:$0xff]
    %v581 = vld [vmem:[#allocation7 + $0x20] sm:$0xff]
    %v582 = vld [vmem:[#allocation7 + $0x28] sm:$0xff]
    %v583 = vld [vmem:[#allocation7 + $0x30] sm:$0xff]
    %v584 = vld [vmem:[#allocation7 + $0x38] sm:$0xff]
    %v585 = vld [vmem:[#allocation7 + $0x40] sm:$0xff]
    %v586 = vld [vmem:[#allocation7 + $0x48] sm:$0xff]
    %v587 = vld [vmem:[#allocation7 + $0x50] sm:$0xff]
    %v588 = vld [vmem:[#allocation7 + $0x58] sm:$0xff]
    %v589 = vld [vmem:[#allocation7 + $0x60] sm:$0xff]
    %v590 = vld [vmem:[#allocation7 + $0x68] sm:$0xff]
    %v591 = vld [vmem:[#allocation7 + $0x70] sm:$0xff]
    %v592 = vld [vmem:[#allocation7 + $0x78] sm:$0xff]
    %v593 = vld [vmem:[#allocation7 + $0x80] sm:$0xff]
    %v594 = vld [vmem:[#allocation7 + $0x88] sm:$0xff]
    %v595 = vld [vmem:[#allocation7 + $0x90] sm:$0xff]
    %v596 = vld [vmem:[#allocation7 + $0x98] sm:$0xff]
    %v597 = vld [vmem:[#allocation7 + $0xa0] sm:$0xff]
    %v598 = vld [vmem:[#allocation7 + $0xa8] sm:$0xff]
    %v599 = vld [vmem:[#allocation7 + $0xb0] sm:$0xff]
    %v600 = vld [vmem:[#allocation7 + $0xb8] sm:$0xff]
    %v601 = vld [vmem:[#allocation7 + $0xc0] sm:$0xff]
    %v602 = vld [vmem:[#allocation7 + $0xc8] sm:$0xff]
    %v603 = vld [vmem:[#allocation7 + $0xd0] sm:$0xff]
    %v604 = vld [vmem:[#allocation7 + $0xd8] sm:$0xff]
    %v605 = vld [vmem:[#allocation7 + $0xe0] sm:$0xff]
    %v606 = vld [vmem:[#allocation7 + $0xe8] sm:$0xff]
    %v607 = vld [vmem:[#allocation7 + $0xf0] sm:$0xff]
    %v608 = vld [vmem:[#allocation7 + $0xf8] sm:$0xff]
    %v609 = vld [vmem:[#allocation7 + $0x100] sm:$0xff]
    %v610 = vld [vmem:[#allocation7 + $0x108] sm:$0xff]
    %v611 = vld [vmem:[#allocation7 + $0x110] sm:$0xff]
    %v612 = vld [vmem:[#allocation7 + $0x118] sm:$0xff]
    %v613 = vld [vmem:[#allocation7 + $0x120] sm:$0xff]
    %v614 = vld [vmem:[#allocation7 + $0x128] sm:$0xff]
    %v615 = vld [vmem:[#allocation7 + $0x130] sm:$0xff]
    %v616 = vld [vmem:[#allocation7 + $0x138] sm:$0xff]
    %v617 = vld [vmem:[#allocation7 + $0x140] sm:$0xff]
    %v618 = vld [vmem:[#allocation7 + $0x148] sm:$0xff]
    %v619 = vld [vmem:[#allocation7 + $0x150] sm:$0xff]
    %v620 = vld [vmem:[#allocation7 + $0x158] sm:$0xff]
    %v621 = vld [vmem:[#allocation7 + $0x160] sm:$0xff]
    %v622 = vld [vmem:[#allocation7 + $0x168] sm:$0xff]
    %v623 = vld [vmem:[#allocation7 + $0x170] sm:$0xff]
    %v624 = vld [vmem:[#allocation7 + $0x178] sm:$0xff]
    %v625 = vld [vmem:[#allocation7 + $0x180] sm:$0xff]
    %v626 = vld [vmem:[#allocation7 + $0x188] sm:$0xff]
    %v627 = vld [vmem:[#allocation7 + $0x190] sm:$0xff]
    %v628 = vld [vmem:[#allocation7 + $0x198] sm:$0xff]
    %v629 = vld [vmem:[#allocation7 + $0x1a0] sm:$0xff]
    %v630 = vld [vmem:[#allocation7 + $0x1a8] sm:$0xff]
    %v631 = vld [vmem:[#allocation7 + $0x1b0] sm:$0xff]
    %v632 = vld [vmem:[#allocation7 + $0x1b8] sm:$0xff]
    %v633 = vld [vmem:[#allocation7 + $0x1c0] sm:$0xff]
    %v634 = vld [vmem:[#allocation7 + $0x1c8] sm:$0xff]
    %v635 = vld [vmem:[#allocation7 + $0x1d0] sm:$0xff]
    %v636 = vld [vmem:[#allocation7 + $0x1d8] sm:$0xff]
    %v637 = vld [vmem:[#allocation7 + $0x1e0] sm:$0xff]
    %v638 = vld [vmem:[#allocation7 + $0x1e8] sm:$0xff]
    %v639 = vld [vmem:[#allocation7 + $0x1f0] sm:$0xff]
    %v640 = vld [vmem:[#allocation7 + $0x1f8] sm:$0xff]
    %v705 = vunpack.c.l.b16 %v577
    %v706 = vunpack.c.h.b16 %v577
    %v707 = vunpack.c.l.b16 %v578
    %v708 = vunpack.c.h.b16 %v578
    %v709 = vunpack.c.l.b16 %v579
    %v710 = vunpack.c.h.b16 %v579
    %v711 = vunpack.c.l.b16 %v580
    %v712 = vunpack.c.h.b16 %v580
    %v713 = vunpack.c.l.b16 %v581
    %v714 = vunpack.c.h.b16 %v581
    %v715 = vunpack.c.l.b16 %v582
    %v716 = vunpack.c.h.b16 %v582
    %v717 = vunpack.c.l.b16 %v583
    %v718 = vunpack.c.h.b16 %v583
    %v719 = vunpack.c.l.b16 %v584
    %v720 = vunpack.c.h.b16 %v584
    %v721 = vunpack.c.l.b16 %v585
    %v722 = vunpack.c.h.b16 %v585
    %v723 = vunpack.c.l.b16 %v586
    %v724 = vunpack.c.h.b16 %v586
    %v725 = vunpack.c.l.b16 %v587
    %v726 = vunpack.c.h.b16 %v587
    %v727 = vunpack.c.l.b16 %v588
    %v728 = vunpack.c.h.b16 %v588
    %v729 = vunpack.c.l.b16 %v589
    %v730 = vunpack.c.h.b16 %v589
    %v731 = vunpack.c.l.b16 %v590
    %v732 = vunpack.c.h.b16 %v590
    %v733 = vunpack.c.l.b16 %v591
    %v734 = vunpack.c.h.b16 %v591
    %v735 = vunpack.c.l.b16 %v592
    %v736 = vunpack.c.h.b16 %v592
    %v737 = vunpack.c.l.b16 %v593
    %v738 = vunpack.c.h.b16 %v593
    %v739 = vunpack.c.l.b16 %v594
    %v740 = vunpack.c.h.b16 %v594
    %v741 = vunpack.c.l.b16 %v595
    %v742 = vunpack.c.h.b16 %v595
    %v743 = vunpack.c.l.b16 %v596
    %v744 = vunpack.c.h.b16 %v596
    %v745 = vunpack.c.l.b16 %v597
    %v746 = vunpack.c.h.b16 %v597
    %v747 = vunpack.c.l.b16 %v598
    %v748 = vunpack.c.h.b16 %v598
    %v749 = vunpack.c.l.b16 %v599
    %v750 = vunpack.c.h.b16 %v599
    %v751 = vunpack.c.l.b16 %v600
    %v752 = vunpack.c.h.b16 %v600
    %v753 = vunpack.c.l.b16 %v601
    %v754 = vunpack.c.h.b16 %v601
    %v755 = vunpack.c.l.b16 %v602
    %v756 = vunpack.c.h.b16 %v602
    %v757 = vunpack.c.l.b16 %v603
    %v758 = vunpack.c.h.b16 %v603
    %v759 = vunpack.c.l.b16 %v604
    %v760 = vunpack.c.h.b16 %v604
    %v761 = vunpack.c.l.b16 %v605
    %v762 = vunpack.c.h.b16 %v605
    %v763 = vunpack.c.l.b16 %v606
    %v764 = vunpack.c.h.b16 %v606
    %v765 = vunpack.c.l.b16 %v607
    %v766 = vunpack.c.h.b16 %v607
    %v767 = vunpack.c.l.b16 %v608
    %v768 = vunpack.c.h.b16 %v608
    %v769 = vunpack.c.l.b16 %v609
    %v770 = vunpack.c.h.b16 %v609
    %v771 = vunpack.c.l.b16 %v610
    %v772 = vunpack.c.h.b16 %v610
    %v773 = vunpack.c.l.b16 %v611
    %v774 = vunpack.c.h.b16 %v611
    %v775 = vunpack.c.l.b16 %v612
    %v776 = vunpack.c.h.b16 %v612
    %v777 = vunpack.c.l.b16 %v613
    %v778 = vunpack.c.h.b16 %v613
    %v779 = vunpack.c.l.b16 %v614
    %v780 = vunpack.c.h.b16 %v614
    %v781 = vunpack.c.l.b16 %v615
    %v782 = vunpack.c.h.b16 %v615
    %v783 = vunpack.c.l.b16 %v616
    %v784 = vunpack.c.h.b16 %v616
    %v785 = vunpack.c.l.b16 %v617
    %v786 = vunpack.c.h.b16 %v617
    %v787 = vunpack.c.l.b16 %v618
    %v788 = vunpack.c.h.b16 %v618
    %v789 = vunpack.c.l.b16 %v619
    %v790 = vunpack.c.h.b16 %v619
    %v791 = vunpack.c.l.b16 %v620
    %v792 = vunpack.c.h.b16 %v620
    %v793 = vunpack.c.l.b16 %v621
    %v794 = vunpack.c.h.b16 %v621
    %v795 = vunpack.c.l.b16 %v622
    %v796 = vunpack.c.h.b16 %v622
    %v797 = vunpack.c.l.b16 %v623
    %v798 = vunpack.c.h.b16 %v623
    %v799 = vunpack.c.l.b16 %v624
    %v800 = vunpack.c.h.b16 %v624
    %v801 = vunpack.c.l.b16 %v625
    %v802 = vunpack.c.h.b16 %v625
    %v803 = vunpack.c.l.b16 %v626
    %v804 = vunpack.c.h.b16 %v626
    %v805 = vunpack.c.l.b16 %v627
    %v806 = vunpack.c.h.b16 %v627
    %v807 = vunpack.c.l.b16 %v628
    %v808 = vunpack.c.h.b16 %v628
    %v809 = vunpack.c.l.b16 %v629
    %v810 = vunpack.c.h.b16 %v629
    %v811 = vunpack.c.l.b16 %v630
    %v812 = vunpack.c.h.b16 %v630
    %v813 = vunpack.c.l.b16 %v631
    %v814 = vunpack.c.h.b16 %v631
    %v815 = vunpack.c.l.b16 %v632
    %v816 = vunpack.c.h.b16 %v632
    %v817 = vunpack.c.l.b16 %v633
    %v818 = vunpack.c.h.b16 %v633
    %v819 = vunpack.c.l.b16 %v634
    %v820 = vunpack.c.h.b16 %v634
    %v821 = vunpack.c.l.b16 %v635
    %v822 = vunpack.c.h.b16 %v635
    %v823 = vunpack.c.l.b16 %v636
    %v824 = vunpack.c.h.b16 %v636
    %v825 = vunpack.c.l.b16 %v637
    %v826 = vunpack.c.h.b16 %v637
    %v827 = vunpack.c.l.b16 %v638
    %v828 = vunpack.c.h.b16 %v638
    %v829 = vunpack.c.l.b16 %v639
    %v830 = vunpack.c.h.b16 %v639
    %v831 = vunpack.c.l.b16 %v640
    %v832 = vunpack.c.h.b16 %v640
    %v833 = vpack.c.b16 %v707, %v705
    %v834 = vpack.c.b16 %v708, %v706
    %v835 = vpack.c.b16 %v711, %v709
    %v836 = vpack.c.b16 %v712, %v710
    %v837 = vpack.c.b16 %v715, %v713
    %v838 = vpack.c.b16 %v716, %v714
    %v839 = vpack.c.b16 %v719, %v717
    %v840 = vpack.c.b16 %v720, %v718
    %v841 = vpack.c.b16 %v723, %v721
    %v842 = vpack.c.b16 %v724, %v722
    %v843 = vpack.c.b16 %v727, %v725
    %v844 = vpack.c.b16 %v728, %v726
    %v845 = vpack.c.b16 %v731, %v729
    %v846 = vpack.c.b16 %v732, %v730
    %v847 = vpack.c.b16 %v735, %v733
    %v848 = vpack.c.b16 %v736, %v734
    %v849 = vpack.c.b16 %v739, %v737
    %v850 = vpack.c.b16 %v740, %v738
    %v851 = vpack.c.b16 %v743, %v741
    %v852 = vpack.c.b16 %v744, %v742
    %v853 = vpack.c.b16 %v747, %v745
    %v854 = vpack.c.b16 %v748, %v746
    %v855 = vpack.c.b16 %v751, %v749
    %v856 = vpack.c.b16 %v752, %v750
    %v857 = vpack.c.b16 %v755, %v753
    %v858 = vpack.c.b16 %v756, %v754
    %v859 = vpack.c.b16 %v759, %v757
    %v860 = vpack.c.b16 %v760, %v758
    %v861 = vpack.c.b16 %v763, %v761
    %v862 = vpack.c.b16 %v764, %v762
    %v863 = vpack.c.b16 %v767, %v765
    %v864 = vpack.c.b16 %v768, %v766
    %v865 = vpack.c.b16 %v771, %v769
    %v866 = vpack.c.b16 %v772, %v770
    %v867 = vpack.c.b16 %v775, %v773
    %v868 = vpack.c.b16 %v776, %v774
    %v869 = vpack.c.b16 %v779, %v777
    %v870 = vpack.c.b16 %v780, %v778
    %v871 = vpack.c.b16 %v783, %v781
    %v872 = vpack.c.b16 %v784, %v782
    %v873 = vpack.c.b16 %v787, %v785
    %v874 = vpack.c.b16 %v788, %v786
    %v875 = vpack.c.b16 %v791, %v789
    %v876 = vpack.c.b16 %v792, %v790
    %v877 = vpack.c.b16 %v795, %v793
    %v878 = vpack.c.b16 %v796, %v794
    %v879 = vpack.c.b16 %v799, %v797
    %v880 = vpack.c.b16 %v800, %v798
    %v881 = vpack.c.b16 %v803, %v801
    %v882 = vpack.c.b16 %v804, %v802
    %v883 = vpack.c.b16 %v807, %v805
    %v884 = vpack.c.b16 %v808, %v806
    %v885 = vpack.c.b16 %v811, %v809
    %v886 = vpack.c.b16 %v812, %v810
    %v887 = vpack.c.b16 %v815, %v813
    %v888 = vpack.c.b16 %v816, %v814
    %v889 = vpack.c.b16 %v819, %v817
    %v890 = vpack.c.b16 %v820, %v818
    %v891 = vpack.c.b16 %v823, %v821
    %v892 = vpack.c.b16 %v824, %v822
    %v893 = vpack.c.b16 %v827, %v825
    %v894 = vpack.c.b16 %v828, %v826
    %v895 = vpack.c.b16 %v831, %v829
    %v896 = vpack.c.b16 %v832, %v830
    %961 = vmatpush.bf16.msra.mxu0 %v847
    %962 = vmatpush.bf16.msra.mxu0 %v845
    %963 = vmatpush.bf16.msra.mxu0 %v843
    %964 = vmatpush.bf16.msra.mxu0 %v841
    %965 = vmatpush.bf16.msra.mxu0 %v839
    %966 = vmatpush.bf16.msra.mxu0 %v837
    %967 = vmatpush.bf16.msra.mxu0 %v835
    %968 = vmatpush.bf16.msra.mxu0 %v833
    %969 = vmatmul.bf16.gmra.mxu0 %v573
    %v970 = vpop.f32.mrf.mxu0
    %v971 = vadd.f32 0.0, %v970
    %v972 = vpop.f32.mrf.mxu0
    %973 = vdwg.mxu0
    %974 = vmatpush.bf16.msra.mxu0 %v863
    %975 = vmatpush.bf16.msra.mxu0 %v861
    %976 = vmatpush.bf16.msra.mxu0 %v859
    %977 = vmatpush.bf16.msra.mxu0 %v857
    %978 = vmatpush.bf16.msra.mxu0 %v855
    %979 = vmatpush.bf16.msra.mxu0 %v853
    %980 = vmatpush.bf16.msra.mxu0 %v851
    %981 = vmatpush.bf16.msra.mxu0 %v849
    %982 = vmatmul.bf16.gmra.mxu0 %v574
    %v983 = vpop.f32.mrf.mxu0
    %v984 = vadd.f32 %v971, %v983
    %v985 = vpop.f32.mrf.mxu0
    %986 = vdwg.mxu0
    %987 = vmatpush.bf16.msra.mxu0 %v879
    %988 = vmatpush.bf16.msra.mxu0 %v877
    %989 = vmatpush.bf16.msra.mxu0 %v875
    %990 = vmatpush.bf16.msra.mxu0 %v873
    %991 = vmatpush.bf16.msra.mxu0 %v871
    %992 = vmatpush.bf16.msra.mxu0 %v869
    %993 = vmatpush.bf16.msra.mxu0 %v867
    %994 = vmatpush.bf16.msra.mxu0 %v865
    %995 = vmatmul.bf16.gmra.mxu0 %v575
    %v996 = vpop.f32.mrf.mxu0
    %v997 = vadd.f32 %v984, %v996
    %v998 = vpop.f32.mrf.mxu0
    %999 = vdwg.mxu0
    %1000 = vmatpush.bf16.msra.mxu0 %v895
    %1001 = vmatpush.bf16.msra.mxu0 %v893
    %1002 = vmatpush.bf16.msra.mxu0 %v891
    %1003 = vmatpush.bf16.msra.mxu0 %v889
    %1004 = vmatpush.bf16.msra.mxu0 %v887
    %1005 = vmatpush.bf16.msra.mxu0 %v885
    %1006 = vmatpush.bf16.msra.mxu0 %v883
    %1007 = vmatpush.bf16.msra.mxu0 %v881
    %1008 = vmatmul.bf16.gmra.mxu0 %v576
    %v1009 = vpop.f32.mrf.mxu0
    %v1010 = vadd.f32 %v997, %v1009
    %v1011 = vpop.f32.mrf.mxu0
    %1012 = vdwg.mxu0
    %1013 = vmatpush.bf16.msra.mxu0 %v848
    %1014 = vmatpush.bf16.msra.mxu0 %v846
    %1015 = vmatpush.bf16.msra.mxu0 %v844
    %1016 = vmatpush.bf16.msra.mxu0 %v842
    %1017 = vmatpush.bf16.msra.mxu0 %v840
    %1018 = vmatpush.bf16.msra.mxu0 %v838
    %1019 = vmatpush.bf16.msra.mxu0 %v836
    %1020 = vmatpush.bf16.msra.mxu0 %v834
    %1021 = vmatmul.bf16.gmra.mxu0 %v573
    %v1022 = vpop.f32.mrf.mxu0
    %v1023 = vadd.f32 0.0, %v1022
    %v1024 = vpop.f32.mrf.mxu0
    %1025 = vdwg.mxu0
    %1026 = vmatpush.bf16.msra.mxu0 %v864
    %1027 = vmatpush.bf16.msra.mxu0 %v862
    %1028 = vmatpush.bf16.msra.mxu0 %v860
    %1029 = vmatpush.bf16.msra.mxu0 %v858
    %1030 = vmatpush.bf16.msra.mxu0 %v856
    %1031 = vmatpush.bf16.msra.mxu0 %v854
    %1032 = vmatpush.bf16.msra.mxu0 %v852
    %1033 = vmatpush.bf16.msra.mxu0 %v850
    %1034 = vmatmul.bf16.gmra.mxu0 %v574
    %v1035 = vpop.f32.mrf.mxu0
    %v1036 = vadd.f32 %v1023, %v1035
    %v1037 = vpop.f32.mrf.mxu0
    %1038 = vdwg.mxu0
    %1039 = vmatpush.bf16.msra.mxu0 %v880
    %1040 = vmatpush.bf16.msra.mxu0 %v878
    %1041 = vmatpush.bf16.msra.mxu0 %v876
    %1042 = vmatpush.bf16.msra.mxu0 %v874
    %1043 = vmatpush.bf16.msra.mxu0 %v872
    %1044 = vmatpush.bf16.msra.mxu0 %v870
    %1045 = vmatpush.bf16.msra.mxu0 %v868
    %1046 = vmatpush.bf16.msra.mxu0 %v866
    %1047 = vmatmul.bf16.gmra.mxu0 %v575
    %v1048 = vpop.f32.mrf.mxu0
    %v1049 = vadd.f32 %v1036, %v1048
    %v1050 = vpop.f32.mrf.mxu0
    %1051 = vdwg.mxu0
    %1052 = vmatpush.bf16.msra.mxu0 %v896
    %1053 = vmatpush.bf16.msra.mxu0 %v894
    %1054 = vmatpush.bf16.msra.mxu0 %v892
    %1055 = vmatpush.bf16.msra.mxu0 %v890
    %1056 = vmatpush.bf16.msra.mxu0 %v888
    %1057 = vmatpush.bf16.msra.mxu0 %v886
    %1058 = vmatpush.bf16.msra.mxu0 %v884
    %1059 = vmatpush.bf16.msra.mxu0 %v882
    %1060 = vmatmul.bf16.gmra.mxu0 %v576
    %v1061 = vpop.f32.mrf.mxu0
    %v1062 = vadd.f32 %v1049, %v1061
    %v1063 = vpop.f32.mrf.mxu0
    %1064 = vdwg.mxu0
    %v1065 = vrot.slane %v1010, 4
    %v1066 = vadd.f32 %v1010, %v1065
    %v1067 = vrot.slane %v1066, 2
    %v1068 = vadd.f32 %v1066, %v1067
    %v1069 = vrot.slane %v1068, 1
    %v1070 = vadd.f32 %v1068, %v1069
    %v1071 = vrot.slane %v1062, 4
    %v1072 = vadd.f32 %v1062, %v1071
    %v1073 = vrot.slane %v1072, 2
    %v1074 = vadd.f32 %v1072, %v1073
    %v1075 = vrot.slane %v1074, 1
    %v1076 = vadd.f32 %v1074, %v1075
    %v1077 = vmul.f32 %v1070, 0.125
    %v1078 = vmul.f32 %v1076, 0.125
    %v1079 = vmul.f32 %v1010, %v1010
    %v1080 = vmul.f32 %v1062, %v1062
    %v1081 = vrot.slane %v1079, 4
    %v1082 = vadd.f32 %v1079, %v1081
    %v1083 = vrot.slane %v1082, 2
    %v1084 = vadd.f32 %v1082, %v1083
    %v1085 = vrot.slane %v1084, 1
    %v1086 = vadd.f32 %v1084, %v1085
    %v1087 = vrot.slane %v1080, 4
    %v1088 = vadd.f32 %v1080, %v1087
    %v1089 = vrot.slane %v1088, 2
    %v1090 = vadd.f32 %v1088, %v1089
    %v1091 = vrot.slane %v1090, 1
    %v1092 = vadd.f32 %v1090, %v1091
    %v1093 = vmul.f32 %v1086, 0.125
    %v1094 = vmul.f32 %v1092, 0.125
    %v1095 = vmul.f32 %v1077, %v1077
    %v1096 = vmul.f32 %v1078, %v1078
    %v1097 = vsub.f32 %v1093, %v1095
    %v1098 = vsub.f32 %v1094, %v1096
    %v1099 = vmax.f32 %v1097, 0.0
    %v1100 = vmax.f32 %v1098, 0.0
    %v1101 = vadd.f32 %v1099, 1e-05
    %v1102 = vadd.f32 %v1100, 1e-05
    %v1103 = vrsqrt.pop %v1101
    %v1104 = vmul.f32 %v1103, %v1101
    %v1105 = vmul.f32 %v1104, %v1103
    %v1106 = vmul.f32 0.5, %v1105
    %v1107 = vsub.f32 1.5, %v1106
    %v1108 = vmul.f32 %v1103, %v1107
    %vm1109 = vweird.f32 %v1101
    %vm1110 = vweird.f32 %v1103
    %vm1111 = vmor %vm1109, %vm1110
    %v1112 = vsel %vm1111, %v1103, %v1108
    %v1113 = vrsqrt.pop %v1102
    %v1114 = vmul.f32 %v1113, %v1102
    %v1115 = vmul.f32 %v1114, %v1113
    %v1116 = vmul.f32 0.5, %v1115
    %v1117 = vsub.f32 1.5, %v1116
    %v1118 = vmul.f32 %v1113, %v1117
    %vm1119 = vweird.f32 %v1102
    %vm1120 = vweird.f32 %v1113
    %vm1121 = vmor %vm1119, %vm1120
    %v1122 = vsel %vm1121, %v1113, %v1118
    %v1125 = vrot.slane %v1122, 6
    %v1126 = vsel %vm506, %v1112, %v1125
    %v1128 = vmul.f32 %v136, %v1126
    %v1130 = vperm.slane %v1128, 0
    %v1131 = vperm.slane %v1128, 2
    %v1134 = vmul.f32 %v1077, %v1130
    %v1135 = vmul.f32 %v1078, %v1131
    %v1138 = vrot.slane %v1135, 6
    %v1139 = vsel %vm506, %v1134, %v1138
    %v1140 = vrot.slane %v1139, 7
    %v1142 = vsub.f32 %v136, %v1140
    %v1143 = vperm.slane %v1130, 0
    %v1144 = vperm.slane %v1131, 0
    %v1145 = vmul.f32 %v1010, %v1143
    %v1146 = vmul.f32 %v1062, %v1144
    %v1148 = vperm.slane %v1142, 1
    %v1149 = vperm.slane %v1142, 3
    %v1152 = vperm.slane %v1148, 1
    %v1153 = vperm.slane %v1149, 1
    %v1154 = vadd.f32 %v1145, %v1152
    %v1155 = vadd.f32 %v1146, %v1153
    %v1156 = vmul.f32 %v1154, 0.01
    %v1157 = vmul.f32 %v1155, 0.01
    %v1158 = vmax.f32 %v1154, %v1156
    %v1159 = vmax.f32 %v1155, %v1157
    %v1160 = vpack.c.bf16 %v1158, %v1158
    %v1161 = vpack.c.bf16 %v1159, %v1159
    %v1162 = vld [vmem:[#allocation8] sm:$0xf]
    %v1163 = vld [vmem:[#allocation8 + $0x4] sm:$0xf]
    %v1164 = vld [vmem:[#allocation8 + $0x8] sm:$0xf]
    %v1165 = vld [vmem:[#allocation8 + $0xc] sm:$0xf]
    %v1166 = vld [vmem:[#allocation8 + $0x10] sm:$0xf]
    %v1167 = vld [vmem:[#allocation8 + $0x14] sm:$0xf]
    %v1168 = vld [vmem:[#allocation8 + $0x18] sm:$0xf]
    %v1169 = vld [vmem:[#allocation8 + $0x1c] sm:$0xf]
    %v1170 = vld [vmem:[#allocation8 + $0x20] sm:$0xf]
    %v1171 = vld [vmem:[#allocation8 + $0x24] sm:$0xf]
    %v1172 = vld [vmem:[#allocation8 + $0x28] sm:$0xf]
    %v1173 = vld [vmem:[#allocation8 + $0x2c] sm:$0xf]
    %v1174 = vld [vmem:[#allocation8 + $0x30] sm:$0xf]
    %v1175 = vld [vmem:[#allocation8 + $0x34] sm:$0xf]
    %v1176 = vld [vmem:[#allocation8 + $0x38] sm:$0xf]
    %v1177 = vld [vmem:[#allocation8 + $0x3c] sm:$0xf]
    %v1178 = vld [vmem:[#allocation8 + $0x40] sm:$0xf]
    %v1179 = vld [vmem:[#allocation8 + $0x44] sm:$0xf]
    %v1180 = vld [vmem:[#allocation8 + $0x48] sm:$0xf]
    %v1181 = vld [vmem:[#allocation8 + $0x4c] sm:$0xf]
    %v1182 = vld [vmem:[#allocation8 + $0x50] sm:$0xf]
    %v1183 = vld [vmem:[#allocation8 + $0x54] sm:$0xf]
    %v1184 = vld [vmem:[#allocation8 + $0x58] sm:$0xf]
    %v1185 = vld [vmem:[#allocation8 + $0x5c] sm:$0xf]
    %v1186 = vld [vmem:[#allocation8 + $0x60] sm:$0xf]
    %v1187 = vld [vmem:[#allocation8 + $0x64] sm:$0xf]
    %v1188 = vld [vmem:[#allocation8 + $0x68] sm:$0xf]
    %v1189 = vld [vmem:[#allocation8 + $0x6c] sm:$0xf]
    %v1190 = vld [vmem:[#allocation8 + $0x70] sm:$0xf]
    %v1191 = vld [vmem:[#allocation8 + $0x74] sm:$0xf]
    %v1192 = vld [vmem:[#allocation8 + $0x78] sm:$0xf]
    %v1193 = vld [vmem:[#allocation8 + $0x7c] sm:$0xf]
    %v1226 = vunpack.c.l.b16 %v1162
    %v1227 = vunpack.c.l.b16 %v1163
    %v1228 = vunpack.c.l.b16 %v1164
    %v1229 = vunpack.c.l.b16 %v1165
    %v1230 = vunpack.c.l.b16 %v1166
    %v1231 = vunpack.c.l.b16 %v1167
    %v1232 = vunpack.c.l.b16 %v1168
    %v1233 = vunpack.c.l.b16 %v1169
    %v1234 = vunpack.c.l.b16 %v1170
    %v1235 = vunpack.c.l.b16 %v1171
    %v1236 = vunpack.c.l.b16 %v1172
    %v1237 = vunpack.c.l.b16 %v1173
    %v1238 = vunpack.c.l.b16 %v1174
    %v1239 = vunpack.c.l.b16 %v1175
    %v1240 = vunpack.c.l.b16 %v1176
    %v1241 = vunpack.c.l.b16 %v1177
    %v1242 = vunpack.c.l.b16 %v1178
    %v1243 = vunpack.c.l.b16 %v1179
    %v1244 = vunpack.c.l.b16 %v1180
    %v1245 = vunpack.c.l.b16 %v1181
    %v1246 = vunpack.c.l.b16 %v1182
    %v1247 = vunpack.c.l.b16 %v1183
    %v1248 = vunpack.c.l.b16 %v1184
    %v1249 = vunpack.c.l.b16 %v1185
    %v1250 = vunpack.c.l.b16 %v1186
    %v1251 = vunpack.c.l.b16 %v1187
    %v1252 = vunpack.c.l.b16 %v1188
    %v1253 = vunpack.c.l.b16 %v1189
    %v1254 = vunpack.c.l.b16 %v1190
    %v1255 = vunpack.c.l.b16 %v1191
    %v1256 = vunpack.c.l.b16 %v1192
    %v1257 = vunpack.c.l.b16 %v1193
    %v1258 = vpack.c.b16 %v1227, %v1226
    %v1259 = vpack.c.b16 %v1229, %v1228
    %v1260 = vpack.c.b16 %v1231, %v1230
    %v1261 = vpack.c.b16 %v1233, %v1232
    %v1262 = vpack.c.b16 %v1235, %v1234
    %v1263 = vpack.c.b16 %v1237, %v1236
    %v1264 = vpack.c.b16 %v1239, %v1238
    %v1265 = vpack.c.b16 %v1241, %v1240
    %v1266 = vpack.c.b16 %v1243, %v1242
    %v1267 = vpack.c.b16 %v1245, %v1244
    %v1268 = vpack.c.b16 %v1247, %v1246
    %v1269 = vpack.c.b16 %v1249, %v1248
    %v1270 = vpack.c.b16 %v1251, %v1250
    %v1271 = vpack.c.b16 %v1253, %v1252
    %v1272 = vpack.c.b16 %v1255, %v1254
    %v1273 = vpack.c.b16 %v1257, %v1256
    %1290 = vmatpush.bf16.msra.mxu0 %v1265
    %1291 = vmatpush.bf16.msra.mxu0 %v1264
    %1292 = vmatpush.bf16.msra.mxu0 %v1263
    %1293 = vmatpush.bf16.msra.mxu0 %v1262
    %1294 = vmatpush.bf16.msra.mxu0 %v1261
    %1295 = vmatpush.bf16.msra.mxu0 %v1260
    %1296 = vmatpush.bf16.msra.mxu0 %v1259
    %1297 = vmatpush.bf16.msra.mxu0 %v1258
    %1298 = vmatmul.bf16.gmra.mxu0 %v1160
    %v1299 = vpop.f32.mrf.mxu0
    %v1300 = vadd.f32 0.0, %v1299
    %v1301 = vpop.f32.mrf.mxu0
    %1302 = vdwg.mxu0
    %1303 = vmatpush.bf16.msra.mxu0 %v1273
    %1304 = vmatpush.bf16.msra.mxu0 %v1272
    %1305 = vmatpush.bf16.msra.mxu0 %v1271
    %1306 = vmatpush.bf16.msra.mxu0 %v1270
    %1307 = vmatpush.bf16.msra.mxu0 %v1269
    %1308 = vmatpush.bf16.msra.mxu0 %v1268
    %1309 = vmatpush.bf16.msra.mxu0 %v1267
    %1310 = vmatpush.bf16.msra.mxu0 %v1266
    %1311 = vmatmul.bf16.gmra.mxu0 %v1161
    %v1312 = vpop.f32.mrf.mxu0
    %v1313 = vadd.f32 %v1300, %v1312
    %v1314 = vpop.f32.mrf.mxu0
    %1315 = vdwg.mxu0
    %v1316 = vrot.slane %v1313, 4
    %v1317 = vadd.f32 %v1313, %v1316
    %v1318 = vrot.slane %v1317, 2
    %v1319 = vadd.f32 %v1317, %v1318
    %v1320 = vrot.slane %v1319, 1
    %v1321 = vadd.f32 %v1319, %v1320
    %v1322 = vmul.f32 %v1321, 0.125
    %v1323 = vmul.f32 %v1313, %v1313
    %v1324 = vrot.slane %v1323, 4
    %v1325 = vadd.f32 %v1323, %v1324
    %v1326 = vrot.slane %v1325, 2
    %v1327 = vadd.f32 %v1325, %v1326
    %v1328 = vrot.slane %v1327, 1
    %v1329 = vadd.f32 %v1327, %v1328
    %v1330 = vmul.f32 %v1329, 0.125
    %v1331 = vmul.f32 %v1322, %v1322
    %v1332 = vsub.f32 %v1330, %v1331
    %v1333 = vmax.f32 %v1332, 0.0
    %v1334 = vadd.f32 %v1333, 1e-05
    %v1335 = vrsqrt.pop %v1334
    %v1336 = vmul.f32 %v1335, %v1334
    %v1337 = vmul.f32 %v1336, %v1335
    %v1338 = vmul.f32 0.5, %v1337
    %v1339 = vsub.f32 1.5, %v1338
    %v1340 = vmul.f32 %v1335, %v1339
    %vm1341 = vweird.f32 %v1334
    %vm1342 = vweird.f32 %v1335
    %vm1343 = vmor %vm1341, %vm1342
    %v1344 = vsel %vm1343, %v1335, %v1340
    %v1346 = vrot.slane %v136, 4
    %v1348 = vmul.f32 %v1346, %v1344
    %v1349 = vmul.f32 %v1322, %v1348
    %v1351 = vrot.slane %v1349, 7
    %v1353 = vsub.f32 %v1346, %v1351
    %v1354 = vperm.slane %v1348, 0
    %v1355 = vmul.f32 %v1313, %v1354
    %v1356 = vperm.slane %v1353, 1
    %v1357 = vadd.f32 %v1355, %v1356
    %v1358 = vmul.f32 %v1357, 0.01
    %v1359 = vmax.f32 %v1357, %v1358
    %v1360 = vpack.c.bf16 %v1359, %v1359
    %v1361 = vld [vmem:[#allocation10] sm:$0xf]
    %v1362 = vld [vmem:[#allocation10 + $0x4] sm:$0xf]
    %v1363 = vld [vmem:[#allocation10 + $0x8] sm:$0xf]
    %v1364 = vld [vmem:[#allocation10 + $0xc] sm:$0xf]
    %v1365 = vld [vmem:[#allocation10 + $0x10] sm:$0xf]
    %v1366 = vld [vmem:[#allocation10 + $0x14] sm:$0xf]
    %v1367 = vld [vmem:[#allocation10 + $0x18] sm:$0xf]
    %v1368 = vld [vmem:[#allocation10 + $0x1c] sm:$0xf]
    %v1369 = vld [vmem:[#allocation10 + $0x20] sm:$0xf]
    %v1370 = vld [vmem:[#allocation10 + $0x24] sm:$0xf]
    %v1371 = vld [vmem:[#allocation10 + $0x28] sm:$0xf]
    %v1372 = vld [vmem:[#allocation10 + $0x2c] sm:$0xf]
    %v1373 = vld [vmem:[#allocation10 + $0x30] sm:$0xf]
    %v1374 = vld [vmem:[#allocation10 + $0x34] sm:$0xf]
    %v1375 = vld [vmem:[#allocation10 + $0x38] sm:$0xf]
    %v1376 = vld [vmem:[#allocation10 + $0x3c] sm:$0xf]
    %v1393 = vunpack.c.l.b16 %v1361
    %v1394 = vunpack.c.l.b16 %v1362
    %v1395 = vunpack.c.l.b16 %v1363
    %v1396 = vunpack.c.l.b16 %v1364
    %v1397 = vunpack.c.l.b16 %v1365
    %v1398 = vunpack.c.l.b16 %v1366
    %v1399 = vunpack.c.l.b16 %v1367
    %v1400 = vunpack.c.l.b16 %v1368
    %v1401 = vunpack.c.l.b16 %v1369
    %v1402 = vunpack.c.l.b16 %v1370
    %v1403 = vunpack.c.l.b16 %v1371
    %v1404 = vunpack.c.l.b16 %v1372
    %v1405 = vunpack.c.l.b16 %v1373
    %v1406 = vunpack.c.l.b16 %v1374
    %v1407 = vunpack.c.l.b16 %v1375
    %v1408 = vunpack.c.l.b16 %v1376
    %v1409 = vpack.c.b16 %v1394, %v1393
    %v1410 = vpack.c.b16 %v1396, %v1395
    %v1411 = vpack.c.b16 %v1398, %v1397
    %v1412 = vpack.c.b16 %v1400, %v1399
    %v1413 = vpack.c.b16 %v1402, %v1401
    %v1414 = vpack.c.b16 %v1404, %v1403
    %v1415 = vpack.c.b16 %v1406, %v1405
    %v1416 = vpack.c.b16 %v1408, %v1407
    %1425 = vmatpush.bf16.msra.mxu0 %v1416
    %1426 = vmatpush.bf16.msra.mxu0 %v1415
    %1427 = vmatpush.bf16.msra.mxu0 %v1414
    %1428 = vmatpush.bf16.msra.mxu0 %v1413
    %1429 = vmatpush.bf16.msra.mxu0 %v1412
    %1430 = vmatpush.bf16.msra.mxu0 %v1411
    %1431 = vmatpush.bf16.msra.mxu0 %v1410
    %1432 = vmatpush.bf16.msra.mxu0 %v1409
    %1433 = vmatmul.bf16.gmra.mxu0 %v1360
    %v1434 = vpop.f32.mrf.mxu0
    %v1435 = vadd.f32 0.0, %v1434
    %v1436 = vpop.f32.mrf.mxu0
    %1437 = vdwg.mxu0
    %v1438 = vrot.slane %v1435, 4
    %v1439 = vadd.f32 %v1435, %v1438
    %v1440 = vrot.slane %v1439, 2
    %v1441 = vadd.f32 %v1439, %v1440
    %v1442 = vrot.slane %v1441, 1
    %v1443 = vadd.f32 %v1441, %v1442
    %v1444 = vmul.f32 %v1443, 0.125
    %v1445 = vmul.f32 %v1435, %v1435
    %v1446 = vrot.slane %v1445, 4
    %v1447 = vadd.f32 %v1445, %v1446
    %v1448 = vrot.slane %v1447, 2
    %v1449 = vadd.f32 %v1447, %v1448
    %v1450 = vrot.slane %v1449, 1
    %v1451 = vadd.f32 %v1449, %v1450
    %v1452 = vmul.f32 %v1451, 0.125
    %v1453 = vmul.f32 %v1444, %v1444
    %v1454 = vsub.f32 %v1452, %v1453
    %v1455 = vmax.f32 %v1454, 0.0
    %v1456 = vadd.f32 %v1455, 1e-05
    %v1457 = vrsqrt.pop %v1456
    %v1458 = vmul.f32 %v1457, %v1456
    %v1459 = vmul.f32 %v1458, %v1457
    %v1460 = vmul.f32 0.5, %v1459
    %v1461 = vsub.f32 1.5, %v1460
    %v1462 = vmul.f32 %v1457, %v1461
    %vm1463 = vweird.f32 %v1456
    %vm1464 = vweird.f32 %v1457
    %vm1465 = vmor %vm1463, %vm1464
    %v1466 = vsel %vm1465, %v1457, %v1462
    %v1467 = vrot.slane %v136, 6
    %v1469 = vmul.f32 %v1467, %v1466
    %v1470 = vmul.f32 %v1444, %v1469
    %v1472 = vrot.slane %v1470, 7
    %v1474 = vsub.f32 %v1467, %v1472
    %v1475 = vperm.slane %v1469, 0
    %v1476 = vmul.f32 %v1435, %v1475
    %v1477 = vperm.slane %v1474, 1
    %v1478 = vadd.f32 %v1476, %v1477
    %v1479 = vmul.f32 %v1478, 0.01
    %v1480 = vmax.f32 %v1478, %v1479
    %v1481 = vpack.c.bf16 %v1480, %v1480
    %v1482 = vld [vmem:[#allocation11] sm:$0xf]
    %v1483 = vld [vmem:[#allocation11 + $0x4] sm:$0xf]
    %v1484 = vld [vmem:[#allocation11 + $0x8] sm:$0xf]
    %v1485 = vld [vmem:[#allocation11 + $0xc] sm:$0xf]
    %v1486 = vld [vmem:[#allocation11 + $0x10] sm:$0xf]
    %v1487 = vld [vmem:[#allocation11 + $0x14] sm:$0xf]
    %v1488 = vld [vmem:[#allocation11 + $0x18] sm:$0xf]
    %v1489 = vld [vmem:[#allocation11 + $0x1c] sm:$0xf]
    %v1490 = vld [vmem:[#allocation11 + $0x20] sm:$0xf]
    %v1491 = vld [vmem:[#allocation11 + $0x24] sm:$0xf]
    %v1492 = vld [vmem:[#allocation11 + $0x28] sm:$0xf]
    %v1493 = vld [vmem:[#allocation11 + $0x2c] sm:$0xf]
    %v1494 = vld [vmem:[#allocation11 + $0x30] sm:$0xf]
    %v1495 = vld [vmem:[#allocation11 + $0x34] sm:$0xf]
    %v1496 = vld [vmem:[#allocation11 + $0x38] sm:$0xf]
    %v1497 = vld [vmem:[#allocation11 + $0x3c] sm:$0xf]
    %v1498 = vld [vmem:[%s6] sm:$0x1]
    %v1500 = vperm.slane %v1498, 0
    %v1518 = vunpack.c.l.b16 %v1482
    %v1519 = vunpack.c.l.b16 %v1483
    %v1520 = vunpack.c.l.b16 %v1484
    %v1521 = vunpack.c.l.b16 %v1485
    %v1522 = vunpack.c.l.b16 %v1486
    %v1523 = vunpack.c.l.b16 %v1487
    %v1524 = vunpack.c.l.b16 %v1488
    %v1525 = vunpack.c.l.b16 %v1489
    %v1526 = vunpack.c.l.b16 %v1490
    %v1527 = vunpack.c.l.b16 %v1491
    %v1528 = vunpack.c.l.b16 %v1492
    %v1529 = vunpack.c.l.b16 %v1493
    %v1530 = vunpack.c.l.b16 %v1494
    %v1531 = vunpack.c.l.b16 %v1495
    %v1532 = vunpack.c.l.b16 %v1496
    %v1533 = vunpack.c.l.b16 %v1497
    %v1534 = vpack.c.b16 %v1519, %v1518
    %v1535 = vpack.c.b16 %v1521, %v1520
    %v1536 = vpack.c.b16 %v1523, %v1522
    %v1537 = vpack.c.b16 %v1525, %v1524
    %v1538 = vpack.c.b16 %v1527, %v1526
    %v1539 = vpack.c.b16 %v1529, %v1528
    %v1540 = vpack.c.b16 %v1531, %v1530
    %v1541 = vpack.c.b16 %v1533, %v1532
    %1550 = vmatpush.bf16.msra.mxu0 %v1541
    %1551 = vmatpush.bf16.msra.mxu0 %v1540
    %1552 = vmatpush.bf16.msra.mxu0 %v1539
    %1553 = vmatpush.bf16.msra.mxu0 %v1538
    %1554 = vmatpush.bf16.msra.mxu0 %v1537
    %1555 = vmatpush.bf16.msra.mxu0 %v1536
    %1556 = vmatpush.bf16.msra.mxu0 %v1535
    %1557 = vmatpush.bf16.msra.mxu0 %v1534
    %1558 = vmatmul.bf16.gmra.mxu0 %v1481
    %v1559 = vpop.f32.mrf.mxu0
    %v1560 = vadd.f32 %v1500, %v1559
    %v1561 = vpop.f32.mrf.mxu0
    %1562 = vdwg.mxu0
    %v1563 = vtanh.pop %v1560
    %1564 = vst [vmem:[#allocation14] sm:$0xff] %v1563
    // Predicated region
    $region62: #{tpu_custom_call.1} parent=1 // pred_check
      _
    $region63: #{tpu_custom_call.1} parent=1 // pred_check_branch
      %1566 = sbr.rel (0) target = $region65
    $region64: #{tpu_custom_call.1} parent=1 // pred_region
      %1568 = vsyncadd [#allocation4], 0
      %s1570 = sshll.u32 [#allocation14], 4
      %s1571 = int_to_ptr.vmem [resolvable:$true] %s1570
      %s1572 = sshll.u32 %s8, 4
      %s1573 = int_to_ptr.hbm [resolvable:$true] %s1572
      %1575 = dma.vmem_to_hbm [thread:$0]  %s1571, 128, %s1573, [#allocation4]
    $region65: #{tpu_custom_call.1} parent=1 // pred_fallthru
      _
    // Predicated region
    $region66: #{tpu_custom_call.1} parent=1 // pred_check
      _
    $region67: #{tpu_custom_call.1} parent=1 // pred_check_branch
      %1577 = sbr.rel (0) target = $region69
    $region68: #{tpu_custom_call.1} parent=1 // pred_region
      %1579 = dma.done [#allocation4], 128
    $region69: #{tpu_custom_call.1} parent=1 // pred_fallthru
      _
    %1580 = vsyncpa [#allocation3], 1
    %1581 = vsyncpa [#allocation6], 1
    %1582 = vsyncpa [#allocation9], 1
    %1583 = vsyncpa [#allocation12], 1
    %1584 = vsyncpa [#allocation4], 1

</llo_original>
